<compile_context>
chip_gen: v6e
topology: v6e:2x2x1
jax: 0.10.0
libtpu: 0.0.40
codegen_flags: <defaults>
</compile_context>

<pallas_src>
import functools
import math

import jax
import jax.numpy as jnp
from jax.experimental import pallas as pl
from jax.experimental.pallas import tpu as pltpu


_VMEM_LIMIT = 40 * 1024 * 1024          # leaves headroom even on v7x (64 MiB physical)
_M_TILES = (256, 128, 64, 32, 16, 8)
_N_TILES = (512, 256, 128)
_K_TILES = (1024, 512, 256, 128)


def _tile(n, candidates):
    """Largest candidate tile that divides n; falls back to the full extent."""
    for c in candidates:
        if n >= c and n % c == 0:
            return c
    return n


# --------------------- fused RMSNorm + projection matmul ---------------------

def _rmsnorm_matmul_kernel(x_ref, g_ref, w_ref, o_ref, *, eps):
    x = x_ref[...].astype(jnp.float32)                        # (tm, K), K = full dim
    var = jnp.mean(x * x, axis=-1, keepdims=True)
    xn = x * jax.lax.rsqrt(var + eps) * g_ref[...].astype(jnp.float32)
    xn = xn.astype(x_ref.dtype)                               # match torch .type_as(x)
    o_ref[...] = jnp.dot(
        xn, w_ref[...], preferred_element_type=jnp.float32
    ).astype(o_ref.dtype)


def rmsnorm_matmul(x, g, w_t, eps):
    """RMSNorm(x; g) @ w_t with the norm fused into the matmul (K kept whole)."""
    M, K = x.shape
    Kw, N = w_t.shape
    assert K == Kw
    tm = _tile(M, _M_TILES)
    tn = _tile(N, _N_TILES)
    kernel = functools.partial(_rmsnorm_matmul_kernel, eps=eps)
    return pl.pallas_call(
        kernel,
        out_shape=jax.ShapeDtypeStruct((M, N), x.dtype),
        grid=(M // tm, N // tn),
        in_specs=[
            pl.BlockSpec((tm, K), lambda i, j: (i, 0)),
            pl.BlockSpec((1, K), lambda i, j: (0, 0)),
            pl.BlockSpec((K, tn), lambda i, j: (0, j)),
        ],
        out_specs=pl.BlockSpec((tm, tn), lambda i, j: (i, j)),
        compiler_params=pltpu.CompilerParams(
            dimension_semantics=("parallel", "parallel"),
            vmem_limit_bytes=_VMEM_LIMIT),
        cost_estimate=pl.CostEstimate(
            flops=2 * M * N * K,
            transcendentals=M,
            bytes_accessed=4 * (M * K + K * N + M * N)),
    )(x, g.reshape(1, K), w_t)


# ----------------- tiled matmul (K accumulation) + residual ------------------

def _matmul_resid_kernel(x_ref, w_ref, r_ref, o_ref, acc_ref):
    @pl.when(pl.program_id(2) == 0)
    def _():
        acc_ref[...] = jnp.zeros_like(acc_ref)

    acc_ref[...] += jnp.dot(x_ref[...], w_ref[...],
                            preferred_element_type=jnp.float32)

    @pl.when(pl.program_id(2) == pl.num_programs(2) - 1)
    def _():
        o_ref[...] = (acc_ref[...] + r_ref[...].astype(jnp.float32)).astype(o_ref.dtype)


def matmul_residual(x, w_t, resid):
    """resid + x @ w_t, with M/N/K tiling and an f32 VMEM accumulator."""
    M, K = x.shape
    Kw, N = w_t.shape
    assert K == Kw and resid.shape == (M, N)
    tm = _tile(M, _M_TILES)
    tn = _tile(N, _N_TILES)
    tk = _tile(K, _K_TILES)
    return pl.pallas_call(
        _matmul_resid_kernel,
        out_shape=jax.ShapeDtypeStruct((M, N), x.dtype),
        grid=(M // tm, N // tn, K // tk),
        in_specs=[
            pl.BlockSpec((tm, tk), lambda i, j, k: (i, k)),
            pl.BlockSpec((tk, tn), lambda i, j, k: (k, j)),
            pl.BlockSpec((tm, tn), lambda i, j, k: (i, j)),
        ],
        out_specs=pl.BlockSpec((tm, tn), lambda i, j, k: (i, j)),
        scratch_shapes=[pltpu.VMEM((tm, tn), jnp.float32)],
        compiler_params=pltpu.CompilerParams(
            dimension_semantics=("parallel", "parallel", "arbitrary"),
            vmem_limit_bytes=_VMEM_LIMIT),
        cost_estimate=pl.CostEstimate(
            flops=2 * M * N * K,
            transcendentals=0,
            bytes_accessed=4 * (M * K + K * N + 2 * M * N)),
    )(x, w_t, resid)


# ----------------- fused SwiGLU gate + down projection + residual ------------

def _swiglu_matmul_kernel(x1_ref, x3_ref, w_ref, r_ref, o_ref):
    x1 = x1_ref[...].astype(jnp.float32)
    x3 = x3_ref[...].astype(jnp.float32)
    gated = (x1 * jax.nn.sigmoid(x1)) * x3                    # silu(x1) * x3 in f32
    acc = jnp.dot(gated.astype(x1_ref.dtype), w_ref[...],
                  preferred_element_type=jnp.float32)
    o_ref[...] = (acc + r_ref[...].astype(jnp.float32)).astype(o_ref.dtype)


def swiglu_matmul_residual(x13, w2_t, resid):
    """resid + (silu(x1) * x3) @ w2_t where x13 = [x1 | x3] along the last axis."""
    M, twoH = x13.shape
    Hd = twoH // 2
    Hw, N = w2_t.shape
    assert Hd * 2 == twoH and Hw == Hd and resid.shape == (M, N)
    tm = _tile(M, _M_TILES)
    tn = _tile(N, _N_TILES)

    if Hd % 128 == 0:
        # Read both halves straight out of the fused W13 output (no XLA slice).
        x1_op, x3_op = x13, x13
        x1_spec = pl.BlockSpec((tm, Hd), lambda i, j: (i, 0))
        x3_spec = pl.BlockSpec((tm, Hd), lambda i, j: (i, 1))
    else:
        # Fallback for lane-unaligned hidden sizes.
        x1_op, x3_op = x13[:, :Hd], x13[:, Hd:]
        x1_spec = pl.BlockSpec((tm, Hd), lambda i, j: (i, 0))
        x3_spec = pl.BlockSpec((tm, Hd), lambda i, j: (i, 0))

    return pl.pallas_call(
        _swiglu_matmul_kernel,
        out_shape=jax.ShapeDtypeStruct((M, N), x13.dtype),
        grid=(M // tm, N // tn),
        in_specs=[
            x1_spec,
            x3_spec,
            pl.BlockSpec((Hd, tn), lambda i, j: (0, j)),
            pl.BlockSpec((tm, tn), lambda i, j: (i, j)),
        ],
        out_specs=pl.BlockSpec((tm, tn), lambda i, j: (i, j)),
        compiler_params=pltpu.CompilerParams(
            dimension_semantics=("parallel", "parallel"),
            vmem_limit_bytes=_VMEM_LIMIT),
        cost_estimate=pl.CostEstimate(
            flops=2 * M * N * Hd,
            transcendentals=M * Hd,
            bytes_accessed=4 * (M * twoH + Hd * N + 2 * M * N)),
    )(x1_op, x3_op, w2_t, resid)


# ------------------- heads-batched attention with fused RoPE -----------------

def _attn_kernel(q_ref, k_ref, v_ref, cos_ref, sin_ref, o_ref, *, scale, half):
    cos = cos_ref[...]                                        # (1, S, D)  f32
    sin = sin_ref[...]                                        # (1, S, D)  f32, pre-signed
    qf = q_ref[...].astype(jnp.float32) * scale               # fold 1/sqrt(D) into q
    kf = k_ref[...].astype(jnp.float32)

    # Rotate-half RoPE (exact vs the interleaved PyTorch form because wq/wk rows
    # were de-interleave-permuted offline; QK^T is invariant to that permutation).
    qr = (qf * cos + pltpu.roll(qf, shift=half, axis=2) * sin).astype(q_ref.dtype)
    kr = (kf * cos + pltpu.roll(kf, shift=half, axis=2) * sin).astype(k_ref.dtype)

    s = jnp.einsum("bqd,bkd->bqk", qr, kr,
                   preferred_element_type=jnp.float32)        # (hb, S, S), no k.T
    m = jnp.max(s, axis=-1, keepdims=True)
    p = jnp.exp(s - m)
    l = jnp.sum(p, axis=-1, keepdims=True)
    o = jnp.einsum("bqk,bkd->bqd", p.astype(v_ref.dtype), v_ref[...],
                   preferred_element_type=jnp.float32)
    o_ref[...] = (o / l).astype(o_ref.dtype)                  # normalize after PV (S*D work)


def pallas_attention(q, k, v, cos, sin):
    """q, k, v: (B*H, S, D); cos/sin: (1, S, D). Returns softmax(q k^T / sqrt(D)) v."""
    BH, S, D = q.shape
    hb = next(c for c in (16, 8, 4, 2, 1) if BH % c == 0)     # heads per grid step
    scale = 1.0 / math.sqrt(D)
    kernel = functools.partial(_attn_kernel, scale=scale, half=D // 2)
    return pl.pallas_call(
        kernel,
        out_shape=jax.ShapeDtypeStruct((BH, S, D), q.dtype),
        grid=(BH // hb,),
        in_specs=[
            pl.BlockSpec((hb, S, D), lambda i: (i, 0, 0)),
            pl.BlockSpec((hb, S, D), lambda i: (i, 0, 0)),
            pl.BlockSpec((hb, S, D), lambda i: (i, 0, 0)),
            pl.BlockSpec((1, S, D), lambda i: (0, 0, 0)),
            pl.BlockSpec((1, S, D), lambda i: (0, 0, 0)),
        ],
        out_specs=pl.BlockSpec((hb, S, D), lambda i: (i, 0, 0)),
        compiler_params=pltpu.CompilerParams(
            dimension_semantics=("parallel",),
            vmem_limit_bytes=_VMEM_LIMIT),
        cost_estimate=pl.CostEstimate(
            flops=4 * BH * S * S * D,
            transcendentals=BH * S * S,
            bytes_accessed=4 * (4 * BH * S * D + 2 * S * D)),
    )(q, k, v, cos, sin)


# ------------------------------ RoPE tables ----------------------------------

def precompute_freq_cis(head_dim, end, theta):
    """Rotation-matrix freq_cis, identical layout to the PyTorch reference."""
    freqs = 1.0 / (theta ** (jnp.arange(0, head_dim, 2, dtype=jnp.float32) / head_dim))
    t = jnp.arange(end, dtype=jnp.float32)
    angles = jnp.outer(t, freqs)                              # (end, D/2)
    cos, sin = jnp.cos(angles), jnp.sin(angles)
    return jnp.stack(
        [jnp.stack([cos, -sin], axis=-1), jnp.stack([sin, cos], axis=-1)], axis=-2
    )                                                         # (end, D/2, 2, 2)


def rope_tables(freq_cis, seqlen):
    """cos / signed-sin tables in rotate-half layout for the attention kernel."""
    cos = freq_cis[:seqlen, :, 0, 0]                          # (S, D/2)
    sin = freq_cis[:seqlen, :, 1, 0]                          # (S, D/2)
    cos_full = jnp.concatenate([cos, cos], axis=-1)[None].astype(jnp.float32)
    sin_signed = jnp.concatenate([-sin, sin], axis=-1)[None].astype(jnp.float32)
    return cos_full, sin_signed                               # each (1, S, D)


# --------------------------- parameter preparation ---------------------------

def _rope_permutation(n_heads, head_dim):
    d = jnp.arange(head_dim)
    within = jnp.concatenate([d[0::2], d[1::2]])              # de-interleave even/odd
    return (jnp.arange(n_heads)[:, None] * head_dim + within[None, :]).reshape(-1)


def prepare_params(raw, n_heads, head_dim):
    """One-time weight prep: RoPE row permutation of wq/wk, fuse+transpose weights."""
    perm = _rope_permutation(n_heads, head_dim)
    wq_p = raw["wq"][perm]
    wk_p = raw["wk"][perm]
    return {
        "wqkv_t": jnp.concatenate([wq_p, wk_p, raw["wv"]], axis=0).T,  # (dim, 3*H*D)
        "wo_t": raw["wo"].T,                                           # (H*D, dim)
        "w13_t": jnp.concatenate([raw["w1"], raw["w3"]], axis=0).T,    # (dim, 2*hidden)
        "w2_t": raw["w2"].T,                                           # (hidden, dim)
        "attn_norm": raw["attn_norm"],
        "ffn_norm": raw["ffn_norm"],
    }


# --------------------------- TransformerBlock.forward ------------------------

def transformer_block_forward(x, params, freq_cis, *, n_heads, head_dim, eps):
    B, S, dim = x.shape
    H, D = n_heads, head_dim
    x2d = x.reshape(B * S, dim)

    # ---- attention: fused RMSNorm + QKV projection ----
    qkv = rmsnorm_matmul(x2d, params["attn_norm"], params["wqkv_t"], eps)  # (B*S, 3*H*D)
    qkv = qkv.reshape(B, S, 3, H, D).transpose(2, 0, 3, 1, 4)              # (3, B, H, S, D)
    q = qkv[0].reshape(B * H, S, D)
    k = qkv[1].reshape(B * H, S, D)
    v = qkv[2].reshape(B * H, S, D)

    cos, sin = rope_tables(freq_cis, S)
    o = pallas_attention(q, k, v, cos, sin)                                # (B*H, S, D)
    o2d = o.reshape(B, H, S, D).transpose(0, 2, 1, 3).reshape(B * S, H * D)

    # ---- output projection with the residual add fused in: h = x + attn_out ----
    h2d = matmul_residual(o2d, params["wo_t"], x2d)                        # (B*S, dim)

    # ---- FFN: fused RMSNorm + W1|W3, then fused SwiGLU + W2 + residual ----
    x13 = rmsnorm_matmul(h2d, params["ffn_norm"], params["w13_t"], eps)    # (B*S, 2*hidden)
    out2d = swiglu_matmul_residual(x13, params["w2_t"], h2d)               # (B*S, dim)
    return out2d.reshape(B, S, dim)


# ------------------------------ pure-JAX reference ---------------------------

def _rmsnorm_ref(x, g, eps):
    xf = x.astype(jnp.float32)
    nrm = xf * jax.lax.rsqrt(jnp.mean(xf * xf, axis=-1, keepdims=True) + eps)
    return (nrm * g.astype(jnp.float32)).astype(x.dtype)


def _apply_rotary_embedding_ref(xq, xk, freq_cis):
    B, S, H, D = xq.shape
    xq_ = xq.reshape(B, S, H, D // 2, 1, 2)
    xk_ = xk.reshape(B, S, H, D // 2, 1, 2)
    f = freq_cis[:S].reshape(1, S, 1, D // 2, 2, 2).astype(jnp.float32)
    xq_out = (xq_ * f).sum(axis=5).reshape(B, S, H, D)
    xk_out = (xk_ * f).sum(axis=5).reshape(B, S, H, D)
    return xq_out.astype(xq.dtype), xk_out.astype(xk.dtype)


def _attention_ref(x, raw, freq_cis, n_heads, head_dim):
    B, S, dim = x.shape
    xq = (x @ raw["wq"].T).reshape(B, S, n_heads, head_dim)
    xk = (x @ raw["wk"].T).reshape(B, S, n_heads, head_dim)
    xv = (x @ raw["wv"].T).reshape(B, S, n_heads, head_dim)
    xq, xk = _apply_rotary_embedding_ref(xq, xk, freq_cis)
    q, k, v = (t.transpose(0, 2, 1, 3) for t in (xq, xk, xv))
    s = jnp.einsum("bhqd,bhkd->bhqk", q, k) / math.sqrt(head_dim)
    a = jax.nn.softmax(s, axis=-1)
    o = jnp.einsum("bhqk,bhkd->bhqd", a, v)
    o = o.transpose(0, 2, 1, 3).reshape(B, S, n_heads * head_dim)
    return o @ raw["wo"].T


def _ffn_ref(x, raw):
    x1 = x @ raw["w1"].T
    x3 = x @ raw["w3"].T
    return (jax.nn.silu(x1) * x3) @ raw["w2"].T


def transformer_block_ref(x, raw, freq_cis, n_heads, head_dim, eps):
    h = x + _attention_ref(_rmsnorm_ref(x, raw["attn_norm"], eps),
                           raw, freq_cis, n_heads, head_dim)
    return h + _ffn_ref(_rmsnorm_ref(h, raw["ffn_norm"], eps), raw)


# ----------------------------------- main ------------------------------------

if __name__ == "__main__":
    # TransformerBlock hyper-params (small but layout-realistic).
    dim, n_heads = 32, 2
    head_dim = dim // n_heads                                  # 16
    rope_theta = 10000.0
    eps = 1e-6
    multiple_of = 128                                          # -> hidden_dim = 128 (lane aligned)
    hidden_dim = int(2 * (4 * dim) / 3)
    hidden_dim = multiple_of * ((hidden_dim + multiple_of - 1) // multiple_of)
    B, S = 2, 8

    key = jax.random.PRNGKey(0)
    keys = jax.random.split(key, 8)
    init_std = dim ** (-0.5)
    out_std = hidden_dim ** (-0.5)
    # TODO(synk): trunc_normal_ clipping at +/-3*std not reproduced; plain normal init used.
    raw = {
        "wq": jax.random.normal(keys[0], (n_heads * head_dim, dim), jnp.float32) * init_std,
        "wk": jax.random.normal(keys[1], (n_heads * head_dim, dim), jnp.float32) * init_std,
        "wv": jax.random.normal(keys[2], (n_heads * head_dim, dim), jnp.float32) * init_std,
        "wo": jax.random.normal(keys[3], (dim, n_heads * head_dim), jnp.float32) * init_std,
        "w1": jax.random.normal(keys[4], (hidden_dim, dim), jnp.float32) * init_std,
        "w3": jax.random.normal(keys[5], (hidden_dim, dim), jnp.float32) * init_std,
        "w2": jax.random.normal(keys[6], (dim, hidden_dim), jnp.float32) * out_std,
        "attn_norm": jnp.ones((dim,), jnp.float32),
        "ffn_norm": jnp.ones((dim,), jnp.float32),
    }
    x = jax.random.normal(keys[7], (B, S, dim), jnp.float32)
    freq_cis = precompute_freq_cis(head_dim, 4 * S, rope_theta)

    params = prepare_params(raw, n_heads, head_dim)

    fwd = jax.jit(functools.partial(transformer_block_forward,
                                    n_heads=n_heads, head_dim=head_dim, eps=eps))
    out = jax.block_until_ready(fwd(x, params, freq_cis))

    ref = transformer_block_ref(x, raw, freq_cis, n_heads, head_dim, eps)
    err = float(jnp.max(jnp.abs(out - ref)))
    assert out.shape == (B, S, dim)
    assert jnp.allclose(out, ref, rtol=1e-3, atol=1e-3), err

    print("KERNEL_OK")
</pallas_src>

<mosaic_0001>
module attributes {stable_mosaic.version = 11 : i64} {
  func.func @_rmsnorm_matmul_kernel(%arg0: i32, %arg1: i32, %arg2: memref<16x32xf32, #tpu.memory_space<vmem>>, %arg3: memref<1x32xf32, #tpu.memory_space<vmem>>, %arg4: memref<32x96xf32, #tpu.memory_space<vmem>>, %arg5: memref<16x96xf32, #tpu.memory_space<vmem>>) attributes {dimension_semantics = [#tpu.dimension_semantics<parallel>, #tpu.dimension_semantics<parallel>], iteration_bounds = array<i64: 1, 1>, scalar_prefetch = 0 : i64, scratch_operands = 0 : i64, tpu.core_type = #tpu.core_type<tc>, window_params = [{transform_indices = @transform_0, window_bounds = array<i64: 16, 32>}, {pipeline_mode = #tpu.pipeline_mode<synchronous>, transform_indices = @transform_1, window_bounds = array<i64: 1, 32>}, {transform_indices = @transform_2, window_bounds = array<i64: 32, 96>}, {transform_indices = @transform_3, window_bounds = array<i64: 16, 96>}]} {
    %c0 = arith.constant 0 : index
    %c0_0 = arith.constant 0 : index
    %0 = vector.load %arg2[%c0, %c0_0] : memref<16x32xf32, #tpu.memory_space<vmem>>, vector<16x32xf32>
    %1 = arith.mulf %0, %0 : vector<16x32xf32>
    %cst = arith.constant dense<0.000000e+00> : vector<16xf32>
    %2 = vector.multi_reduction <add>, %1, %cst [1] : vector<16x32xf32> to vector<16xf32>
    %3 = vector.shape_cast %2 : vector<16xf32> to vector<16x1xf32>
    %cst_1 = arith.constant 3.200000e+01 : f32
    %4 = vector.broadcast %cst_1 : f32 to vector<16x1xf32>
    %5 = arith.divf %3, %4 : vector<16x1xf32>
    %cst_2 = arith.constant 9.99999997E-7 : f32
    %6 = vector.broadcast %cst_2 : f32 to vector<16x1xf32>
    %7 = arith.addf %5, %6 : vector<16x1xf32>
    %8 = math.rsqrt %7 : vector<16x1xf32>
    %9 = vector.broadcast %8 : vector<16x1xf32> to vector<16x32xf32>
    %10 = arith.mulf %0, %9 : vector<16x32xf32>
    %c0_3 = arith.constant 0 : index
    %c0_4 = arith.constant 0 : index
    %11 = vector.load %arg3[%c0_3, %c0_4] : memref<1x32xf32, #tpu.memory_space<vmem>>, vector<1x32xf32>
    %12 = vector.broadcast %11 : vector<1x32xf32> to vector<16x32xf32>
    %13 = arith.mulf %10, %12 : vector<16x32xf32>
    %c0_5 = arith.constant 0 : index
    %c0_6 = arith.constant 0 : index
    %14 = vector.load %arg4[%c0_5, %c0_6] : memref<32x96xf32, #tpu.memory_space<vmem>>, vector<32x96xf32>
    %cst_7 = arith.constant dense<0.000000e+00> : vector<16x96xf32>
    %15 = tpu.matmul %13, %14, %cst_7 {dimension_numbers = #tpu.dot_dimension_numbers<[1], [0], [0], [1], [0, 0, 1, 1], [], []>} : vector<16x32xf32>, vector<32x96xf32>, vector<16x96xf32> -> vector<16x96xf32>
    %c0_8 = arith.constant 0 : index
    %c0_9 = arith.constant 0 : index
    %16 = vector.load %arg5[%c0_8, %c0_9] : memref<16x96xf32, #tpu.memory_space<vmem>>, vector<16x96xf32>
    tpu.vector_store %arg5[%c0_8, %c0_9], %15 {strides = array<i32>} : memref<16x96xf32, #tpu.memory_space<vmem>>, vector<16x96xf32>,
    return
  }
  func.func @transform_0(%arg0: i32, %arg1: i32) -> (i32, i32) {
    %c0_i32 = arith.constant 0 : i32
    %c0_i32_0 = arith.constant 0 : i32
    return %arg0, %c0_i32 : i32, i32
  }
  func.func @transform_1(%arg0: i32, %arg1: i32) -> (i32, i32) {
    %c0_i32 = arith.constant 0 : i32
    %c0_i32_0 = arith.constant 0 : i32
    %c0_i32_1 = arith.constant 0 : i32
    return %c0_i32, %c0_i32_0 : i32, i32
  }
  func.func @transform_2(%arg0: i32, %arg1: i32) -> (i32, i32) {
    %c0_i32 = arith.constant 0 : i32
    %c0_i32_0 = arith.constant 0 : i32
    return %c0_i32, %arg1 : i32, i32
  }
  func.func @transform_3(%arg0: i32, %arg1: i32) -> (i32, i32) {
    %c0_i32 = arith.constant 0 : i32
    return %arg0, %arg1 : i32, i32
  }
}

module attributes {stable_mosaic.version = 11 : i64} {
  func.func @_attn_kernel(%arg0: i32, %arg1: memref<4x8x16xf32, #tpu.memory_space<vmem>>, %arg2: memref<4x8x16xf32, #tpu.memory_space<vmem>>, %arg3: memref<4x8x16xf32, #tpu.memory_space<vmem>>, %arg4: memref<1x8x16xf32, #tpu.memory_space<vmem>>, %arg5: memref<1x8x16xf32, #tpu.memory_space<vmem>>, %arg6: memref<4x8x16xf32, #tpu.memory_space<vmem>>) attributes {dimension_semantics = [#tpu.dimension_semantics<parallel>], iteration_bounds = array<i64: 1>, scalar_prefetch = 0 : i64, scratch_operands = 0 : i64, tpu.core_type = #tpu.core_type<tc>, window_params = [{transform_indices = @transform_0, window_bounds = array<i64: 4, 8, 16>}, {transform_indices = @transform_1, window_bounds = array<i64: 4, 8, 16>}, {transform_indices = @transform_2, window_bounds = array<i64: 4, 8, 16>}, {pipeline_mode = #tpu.pipeline_mode<synchronous>, transform_indices = @transform_3, window_bounds = array<i64: 1, 8, 16>}, {pipeline_mode = #tpu.pipeline_mode<synchronous>, transform_indices = @transform_4, window_bounds = array<i64: 1, 8, 16>}, {transform_indices = @transform_5, window_bounds = array<i64: 4, 8, 16>}]} {
    %c0 = arith.constant 0 : index
    %c0_0 = arith.constant 0 : index
    %c0_1 = arith.constant 0 : index
    %0 = vector.load %arg4[%c0, %c0_0, %c0_1] : memref<1x8x16xf32, #tpu.memory_space<vmem>>, vector<1x8x16xf32>
    %c0_2 = arith.constant 0 : index
    %c0_3 = arith.constant 0 : index
    %c0_4 = arith.constant 0 : index
    %1 = vector.load %arg5[%c0_2, %c0_3, %c0_4] : memref<1x8x16xf32, #tpu.memory_space<vmem>>, vector<1x8x16xf32>
    %c0_5 = arith.constant 0 : index
    %c0_6 = arith.constant 0 : index
    %c0_7 = arith.constant 0 : index
    %2 = vector.load %arg1[%c0_5, %c0_6, %c0_7] : memref<4x8x16xf32, #tpu.memory_space<vmem>>, vector<4x8x16xf32>
    %cst = arith.constant 2.500000e-01 : f32
    %3 = vector.broadcast %cst : f32 to vector<4x8x16xf32>
    %4 = arith.mulf %2, %3 : vector<4x8x16xf32>
    %c0_8 = arith.constant 0 : index
    %c0_9 = arith.constant 0 : index
    %c0_10 = arith.constant 0 : index
    %5 = vector.load %arg2[%c0_8, %c0_9, %c0_10] : memref<4x8x16xf32, #tpu.memory_space<vmem>>, vector<4x8x16xf32>
    %6 = vector.broadcast %0 : vector<1x8x16xf32> to vector<4x8x16xf32>
    %7 = arith.mulf %4, %6 : vector<4x8x16xf32>
    %c8_i32 = arith.constant 8 : i32
    %8 = tpu.dynamic_rotate %4 by %c8_i32 dim 2 : vector<4x8x16xf32>, i32 -> vector<4x8x16xf32>
    %9 = vector.broadcast %1 : vector<1x8x16xf32> to vector<4x8x16xf32>
    %10 = arith.mulf %8, %9 : vector<4x8x16xf32>
    %11 = arith.addf %7, %10 : vector<4x8x16xf32>
    %12 = vector.broadcast %0 : vector<1x8x16xf32> to vector<4x8x16xf32>
    %13 = arith.mulf %5, %12 : vector<4x8x16xf32>
    %c8_i32_11 = arith.constant 8 : i32
    %14 = tpu.dynamic_rotate %5 by %c8_i32_11 dim 2 : vector<4x8x16xf32>, i32 -> vector<4x8x16xf32>
    %15 = vector.broadcast %1 : vector<1x8x16xf32> to vector<4x8x16xf32>
    %16 = arith.mulf %14, %15 : vector<4x8x16xf32>
    %17 = arith.addf %13, %16 : vector<4x8x16xf32>
    "tpu.trace_start"() <{level = 10 : i32, message = "bqd,bkd->bqk"}> : () -> ()
    %cst_12 = arith.constant dense<0.000000e+00> : vector<4x8x8xf32>
    %18 = tpu.matmul %11, %17, %cst_12 {dimension_numbers = #tpu.dot_dimension_numbers<[2], [2], [1], [1], [0, 0, 0, 1, 1, 1], [0], [0]>} : vector<4x8x16xf32>, vector<4x8x16xf32>, vector<4x8x8xf32> -> vector<4x8x8xf32>
    "tpu.trace_stop"() : () -> ()
    %cst_13 = arith.constant dense<0xFF800000> : vector<4x8xf32>
    %19 = vector.multi_reduction <maximumf>, %18, %cst_13 [2] : vector<4x8x8xf32> to vector<4x8xf32>
    %20 = vector.shape_cast %19 : vector<4x8xf32> to vector<4x8x1xf32>
    %21 = vector.broadcast %20 : vector<4x8x1xf32> to vector<4x8x8xf32>
    %22 = arith.subf %18, %21 : vector<4x8x8xf32>
    %23 = math.exp %22 : vector<4x8x8xf32>
    %cst_14 = arith.constant dense<0.000000e+00> : vector<4x8xf32>
    %24 = vector.multi_reduction <add>, %23, %cst_14 [2] : vector<4x8x8xf32> to vector<4x8xf32>
    %25 = vector.shape_cast %24 : vector<4x8xf32> to vector<4x8x1xf32>
    %c0_15 = arith.constant 0 : index
    %c0_16 = arith.constant 0 : index
    %c0_17 = arith.constant 0 : index
    %26 = vector.load %arg3[%c0_15, %c0_16, %c0_17] : memref<4x8x16xf32, #tpu.memory_space<vmem>>, vector<4x8x16xf32>
    "tpu.trace_start"() <{level = 10 : i32, message = "bqk,bkd->bqd"}> : () -> ()
    %cst_18 = arith.constant dense<0.000000e+00> : vector<4x8x16xf32>
    %27 = tpu.matmul %23, %26, %cst_18 {dimension_numbers = #tpu.dot_dimension_numbers<[2], [1], [1], [2], [0, 0, 0, 1, 1, 2], [0], [0]>} : vector<4x8x8xf32>, vector<4x8x16xf32>, vector<4x8x16xf32> -> vector<4x8x16xf32>
    "tpu.trace_stop"() : () -> ()
    %28 = vector.broadcast %25 : vector<4x8x1xf32> to vector<4x8x16xf32>
    %29 = arith.divf %27, %28 : vector<4x8x16xf32>
    %c0_19 = arith.constant 0 : index
    %c0_20 = arith.constant 0 : index
    %c0_21 = arith.constant 0 : index
    %30 = vector.load %arg6[%c0_19, %c0_20, %c0_21] : memref<4x8x16xf32, #tpu.memory_space<vmem>>, vector<4x8x16xf32>
    tpu.vector_store %arg6[%c0_19, %c0_20, %c0_21], %29 {strides = array<i32>} : memref<4x8x16xf32, #tpu.memory_space<vmem>>, vector<4x8x16xf32>,
    return
  }
  func.func @transform_0(%arg0: i32) -> (i32, i32, i32) {
    %c0_i32 = arith.constant 0 : i32
    %c0_i32_0 = arith.constant 0 : i32
    %c0_i32_1 = arith.constant 0 : i32
    return %arg0, %c0_i32, %c0_i32_0 : i32, i32, i32
  }
  func.func @transform_1(%arg0: i32) -> (i32, i32, i32) {
    %c0_i32 = arith.constant 0 : i32
    %c0_i32_0 = arith.constant 0 : i32
    %c0_i32_1 = arith.constant 0 : i32
    return %arg0, %c0_i32, %c0_i32_0 : i32, i32, i32
  }
  func.func @transform_2(%arg0: i32) -> (i32, i32, i32) {
    %c0_i32 = arith.constant 0 : i32
    %c0_i32_0 = arith.constant 0 : i32
    %c0_i32_1 = arith.constant 0 : i32
    return %arg0, %c0_i32, %c0_i32_0 : i32, i32, i32
  }
  func.func @transform_3(%arg0: i32) -> (i32, i32, i32) {
    %c0_i32 = arith.constant 0 : i32
    %c0_i32_0 = arith.constant 0 : i32
    %c0_i32_1 = arith.constant 0 : i32
    %c0_i32_2 = arith.constant 0 : i32
    return %c0_i32, %c0_i32_0, %c0_i32_1 : i32, i32, i32
  }
  func.func @transform_4(%arg0: i32) -> (i32, i32, i32) {
    %c0_i32 = arith.constant 0 : i32
    %c0_i32_0 = arith.constant 0 : i32
    %c0_i32_1 = arith.constant 0 : i32
    %c0_i32_2 = arith.constant 0 : i32
    return %c0_i32, %c0_i32_0, %c0_i32_1 : i32, i32, i32
  }
  func.func @transform_5(%arg0: i32) -> (i32, i32, i32) {
    %c0_i32 = arith.constant 0 : i32
    %c0_i32_0 = arith.constant 0 : i32
    %c0_i32_1 = arith.constant 0 : i32
    return %arg0, %c0_i32, %c0_i32_0 : i32, i32, i32
  }
}

module attributes {stable_mosaic.version = 11 : i64} {
  func.func @_matmul_resid_kernel(%arg0: i32, %arg1: i32, %arg2: i32, %arg3: memref<16x32xf32, #tpu.memory_space<vmem>>, %arg4: memref<32x32xf32, #tpu.memory_space<vmem>>, %arg5: memref<16x32xf32, #tpu.memory_space<vmem>>, %arg6: memref<16x32xf32, #tpu.memory_space<vmem>>, %arg7: memref<16x32xf32, #tpu.memory_space<vmem>>) attributes {dimension_semantics = [#tpu.dimension_semantics<parallel>, #tpu.dimension_semantics<parallel>, #tpu.dimension_semantics<arbitrary>], iteration_bounds = array<i64: 1, 1, 1>, scalar_prefetch = 0 : i64, scratch_operands = 1 : i64, tpu.core_type = #tpu.core_type<tc>, window_params = [{transform_indices = @transform_0, window_bounds = array<i64: 16, 32>}, {transform_indices = @transform_1, window_bounds = array<i64: 32, 32>}, {transform_indices = @transform_2, window_bounds = array<i64: 16, 32>}, {transform_indices = @transform_3, window_bounds = array<i64: 16, 32>}]} {
    %c0_i32 = arith.constant 0 : i32
    %0 = arith.cmpi eq, %arg2, %c0_i32 : i32
    %1 = arith.extui %0 : i1 to i32
    %c0_i32_0 = arith.constant 0 : i32
    %2 = arith.cmpi ne, %1, %c0_i32_0 : i32
    scf.if %2 {
      %cst_10 = arith.constant 0.000000e+00 : f32
      %12 = vector.broadcast %cst_10 : f32 to vector<16x32xf32>
      %c0_11 = arith.constant 0 : index
      %c0_12 = arith.constant 0 : index
      %13 = vector.load %arg7[%c0_11, %c0_12] : memref<16x32xf32, #tpu.memory_space<vmem>>, vector<16x32xf32>
      tpu.vector_store %arg7[%c0_11, %c0_12], %12 {strides = array<i32>} : memref<16x32xf32, #tpu.memory_space<vmem>>, vector<16x32xf32>,
    } else {
    }
    %c0 = arith.constant 0 : index
    %c0_1 = arith.constant 0 : index
    %3 = vector.load %arg7[%c0, %c0_1] : memref<16x32xf32, #tpu.memory_space<vmem>>, vector<16x32xf32>
    %c0_2 = arith.constant 0 : index
    %c0_3 = arith.constant 0 : index
    %4 = vector.load %arg3[%c0_2, %c0_3] : memref<16x32xf32, #tpu.memory_space<vmem>>, vector<16x32xf32>
    %c0_4 = arith.constant 0 : index
    %c0_5 = arith.constant 0 : index
    %5 = vector.load %arg4[%c0_4, %c0_5] : memref<32x32xf32, #tpu.memory_space<vmem>>, vector<32x32xf32>
    %cst = arith.constant dense<0.000000e+00> : vector<16x32xf32>
    %6 = tpu.matmul %4, %5, %cst {dimension_numbers = #tpu.dot_dimension_numbers<[1], [0], [0], [1], [0, 0, 1, 1], [], []>} : vector<16x32xf32>, vector<32x32xf32>, vector<16x32xf32> -> vector<16x32xf32>
    %7 = arith.addf %3, %6 : vector<16x32xf32>
    %c0_6 = arith.constant 0 : index
    %c0_7 = arith.constant 0 : index
    %8 = vector.load %arg7[%c0_6, %c0_7] : memref<16x32xf32, #tpu.memory_space<vmem>>, vector<16x32xf32>
    tpu.vector_store %arg7[%c0_6, %c0_7], %7 {strides = array<i32>} : memref<16x32xf32, #tpu.memory_space<vmem>>, vector<16x32xf32>,
    %c0_i32_8 = arith.constant 0 : i32
    %9 = arith.cmpi eq, %arg2, %c0_i32_8 : i32
    %10 = arith.extui %9 : i1 to i32
    %c0_i32_9 = arith.constant 0 : i32
    %11 = arith.cmpi ne, %10, %c0_i32_9 : i32
    scf.if %11 {
      %c0_10 = arith.constant 0 : index
      %c0_11 = arith.constant 0 : index
      %12 = vector.load %arg7[%c0_10, %c0_11] : memref<16x32xf32, #tpu.memory_space<vmem>>, vector<16x32xf32>
      %c0_12 = arith.constant 0 : index
      %c0_13 = arith.constant 0 : index
      %13 = vector.load %arg5[%c0_12, %c0_13] : memref<16x32xf32, #tpu.memory_space<vmem>>, vector<16x32xf32>
      %14 = arith.addf %12, %13 : vector<16x32xf32>
      %c0_14 = arith.constant 0 : index
      %c0_15 = arith.constant 0 : index
      %15 = vector.load %arg6[%c0_14, %c0_15] : memref<16x32xf32, #tpu.memory_space<vmem>>, vector<16x32xf32>
      tpu.vector_store %arg6[%c0_14, %c0_15], %14 {strides = array<i32>} : memref<16x32xf32, #tpu.memory_space<vmem>>, vector<16x32xf32>,
    } else {
    }
    return
  }
  func.func @transform_0(%arg0: i32, %arg1: i32, %arg2: i32) -> (i32, i32) {
    %c0_i32 = arith.constant 0 : i32
    return %arg0, %arg2 : i32, i32
  }
  func.func @transform_1(%arg0: i32, %arg1: i32, %arg2: i32) -> (i32, i32) {
    %c0_i32 = arith.constant 0 : i32
    return %arg2, %arg1 : i32, i32
  }
  func.func @transform_2(%arg0: i32, %arg1: i32, %arg2: i32) -> (i32, i32) {
    %c0_i32 = arith.constant 0 : i32
    return %arg0, %arg1 : i32, i32
  }
  func.func @transform_3(%arg0: i32, %arg1: i32, %arg2: i32) -> (i32, i32) {
    %c0_i32 = arith.constant 0 : i32
    return %arg0, %arg1 : i32, i32
  }
}

module attributes {stable_mosaic.version = 11 : i64} {
  func.func @_rmsnorm_matmul_kernel(%arg0: i32, %arg1: i32, %arg2: memref<16x32xf32, #tpu.memory_space<vmem>>, %arg3: memref<1x32xf32, #tpu.memory_space<vmem>>, %arg4: memref<32x256xf32, #tpu.memory_space<vmem>>, %arg5: memref<16x256xf32, #tpu.memory_space<vmem>>) attributes {dimension_semantics = [#tpu.dimension_semantics<parallel>, #tpu.dimension_semantics<parallel>], iteration_bounds = array<i64: 1, 1>, scalar_prefetch = 0 : i64, scratch_operands = 0 : i64, tpu.core_type = #tpu.core_type<tc>, window_params = [{transform_indices = @transform_0, window_bounds = array<i64: 16, 32>}, {pipeline_mode = #tpu.pipeline_mode<synchronous>, transform_indices = @transform_1, window_bounds = array<i64: 1, 32>}, {transform_indices = @transform_2, window_bounds = array<i64: 32, 256>}, {transform_indices = @transform_3, window_bounds = array<i64: 16, 256>}]} {
    %c0 = arith.constant 0 : index
    %c0_0 = arith.constant 0 : index
    %0 = vector.load %arg2[%c0, %c0_0] : memref<16x32xf32, #tpu.memory_space<vmem>>, vector<16x32xf32>
    %1 = arith.mulf %0, %0 : vector<16x32xf32>
    %cst = arith.constant dense<0.000000e+00> : vector<16xf32>
    %2 = vector.multi_reduction <add>, %1, %cst [1] : vector<16x32xf32> to vector<16xf32>
    %3 = vector.shape_cast %2 : vector<16xf32> to vector<16x1xf32>
    %cst_1 = arith.constant 3.200000e+01 : f32
    %4 = vector.broadcast %cst_1 : f32 to vector<16x1xf32>
    %5 = arith.divf %3, %4 : vector<16x1xf32>
    %cst_2 = arith.constant 9.99999997E-7 : f32
    %6 = vector.broadcast %cst_2 : f32 to vector<16x1xf32>
    %7 = arith.addf %5, %6 : vector<16x1xf32>
    %8 = math.rsqrt %7 : vector<16x1xf32>
    %9 = vector.broadcast %8 : vector<16x1xf32> to vector<16x32xf32>
    %10 = arith.mulf %0, %9 : vector<16x32xf32>
    %c0_3 = arith.constant 0 : index
    %c0_4 = arith.constant 0 : index
    %11 = vector.load %arg3[%c0_3, %c0_4] : memref<1x32xf32, #tpu.memory_space<vmem>>, vector<1x32xf32>
    %12 = vector.broadcast %11 : vector<1x32xf32> to vector<16x32xf32>
    %13 = arith.mulf %10, %12 : vector<16x32xf32>
    %c0_5 = arith.constant 0 : index
    %c0_6 = arith.constant 0 : index
    %14 = vector.load %arg4[%c0_5, %c0_6] : memref<32x256xf32, #tpu.memory_space<vmem>>, vector<32x256xf32>
    %cst_7 = arith.constant dense<0.000000e+00> : vector<16x256xf32>
    %15 = tpu.matmul %13, %14, %cst_7 {dimension_numbers = #tpu.dot_dimension_numbers<[1], [0], [0], [1], [0, 0, 1, 1], [], []>} : vector<16x32xf32>, vector<32x256xf32>, vector<16x256xf32> -> vector<16x256xf32>
    %c0_8 = arith.constant 0 : index
    %c0_9 = arith.constant 0 : index
    %16 = vector.load %arg5[%c0_8, %c0_9] : memref<16x256xf32, #tpu.memory_space<vmem>>, vector<16x256xf32>
    tpu.vector_store %arg5[%c0_8, %c0_9], %15 {strides = array<i32>} : memref<16x256xf32, #tpu.memory_space<vmem>>, vector<16x256xf32>,
    return
  }
  func.func @transform_0(%arg0: i32, %arg1: i32) -> (i32, i32) {
    %c0_i32 = arith.constant 0 : i32
    %c0_i32_0 = arith.constant 0 : i32
    return %arg0, %c0_i32 : i32, i32
  }
  func.func @transform_1(%arg0: i32, %arg1: i32) -> (i32, i32) {
    %c0_i32 = arith.constant 0 : i32
    %c0_i32_0 = arith.constant 0 : i32
    %c0_i32_1 = arith.constant 0 : i32
    return %c0_i32, %c0_i32_0 : i32, i32
  }
  func.func @transform_2(%arg0: i32, %arg1: i32) -> (i32, i32) {
    %c0_i32 = arith.constant 0 : i32
    %c0_i32_0 = arith.constant 0 : i32
    return %c0_i32, %arg1 : i32, i32
  }
  func.func @transform_3(%arg0: i32, %arg1: i32) -> (i32, i32) {
    %c0_i32 = arith.constant 0 : i32
    return %arg0, %arg1 : i32, i32
  }
}

module attributes {stable_mosaic.version = 11 : i64} {
  func.func @_swiglu_matmul_kernel(%arg0: i32, %arg1: i32, %arg2: memref<16x128xf32, #tpu.memory_space<vmem>>, %arg3: memref<16x128xf32, #tpu.memory_space<vmem>>, %arg4: memref<128x32xf32, #tpu.memory_space<vmem>>, %arg5: memref<16x32xf32, #tpu.memory_space<vmem>>, %arg6: memref<16x32xf32, #tpu.memory_space<vmem>>) attributes {dimension_semantics = [#tpu.dimension_semantics<parallel>, #tpu.dimension_semantics<parallel>], iteration_bounds = array<i64: 1, 1>, scalar_prefetch = 0 : i64, scratch_operands = 0 : i64, tpu.core_type = #tpu.core_type<tc>, window_params = [{transform_indices = @transform_0, window_bounds = array<i64: 16, 128>}, {transform_indices = @transform_1, window_bounds = array<i64: 16, 128>}, {transform_indices = @transform_2, window_bounds = array<i64: 128, 32>}, {transform_indices = @transform_3, window_bounds = array<i64: 16, 32>}, {transform_indices = @transform_4, window_bounds = array<i64: 16, 32>}]} {
    %c0 = arith.constant 0 : index
    %c0_0 = arith.constant 0 : index
    %0 = vector.load %arg2[%c0, %c0_0] : memref<16x128xf32, #tpu.memory_space<vmem>>, vector<16x128xf32>
    %c0_1 = arith.constant 0 : index
    %c0_2 = arith.constant 0 : index
    %1 = vector.load %arg3[%c0_1, %c0_2] : memref<16x128xf32, #tpu.memory_space<vmem>>, vector<16x128xf32>
    %2 = arith.negf %0 : vector<16x128xf32>
    %3 = math.exp %2 : vector<16x128xf32>
    %cst = arith.constant 1.000000e+00 : f32
    %4 = vector.broadcast %cst : f32 to vector<16x128xf32>
    %5 = arith.addf %4, %3 : vector<16x128xf32>
    %6 = arith.divf %4, %5 : vector<16x128xf32>
    %7 = arith.mulf %0, %6 : vector<16x128xf32>
    %8 = arith.mulf %7, %1 : vector<16x128xf32>
    %c0_3 = arith.constant 0 : index
    %c0_4 = arith.constant 0 : index
    %9 = vector.load %arg4[%c0_3, %c0_4] : memref<128x32xf32, #tpu.memory_space<vmem>>, vector<128x32xf32>
    %cst_5 = arith.constant dense<0.000000e+00> : vector<16x32xf32>
    %10 = tpu.matmul %8, %9, %cst_5 {dimension_numbers = #tpu.dot_dimension_numbers<[1], [0], [0], [1], [0, 0, 1, 1], [], []>} : vector<16x128xf32>, vector<128x32xf32>, vector<16x32xf32> -> vector<16x32xf32>
    %c0_6 = arith.constant 0 : index
    %c0_7 = arith.constant 0 : index
    %11 = vector.load %arg5[%c0_6, %c0_7] : memref<16x32xf32, #tpu.memory_space<vmem>>, vector<16x32xf32>
    %12 = arith.addf %10, %11 : vector<16x32xf32>
    %c0_8 = arith.constant 0 : index
    %c0_9 = arith.constant 0 : index
    %13 = vector.load %arg6[%c0_8, %c0_9] : memref<16x32xf32, #tpu.memory_space<vmem>>, vector<16x32xf32>
    tpu.vector_store %arg6[%c0_8, %c0_9], %12 {strides = array<i32>} : memref<16x32xf32, #tpu.memory_space<vmem>>, vector<16x32xf32>,
    return
  }
  func.func @transform_0(%arg0: i32, %arg1: i32) -> (i32, i32) {
    %c0_i32 = arith.constant 0 : i32
    %c0_i32_0 = arith.constant 0 : i32
    return %arg0, %c0_i32 : i32, i32
  }
  func.func @transform_1(%arg0: i32, %arg1: i32) -> (i32, i32) {
    %c1_i32 = arith.constant 1 : i32
    %c0_i32 = arith.constant 0 : i32
    return %arg0, %c1_i32 : i32, i32
  }
  func.func @transform_2(%arg0: i32, %arg1: i32) -> (i32, i32) {
    %c0_i32 = arith.constant 0 : i32
    %c0_i32_0 = arith.constant 0 : i32
    return %c0_i32, %arg1 : i32, i32
  }
  func.func @transform_3(%arg0: i32, %arg1: i32) -> (i32, i32) {
    %c0_i32 = arith.constant 0 : i32
    return %arg0, %arg1 : i32, i32
  }
  func.func @transform_4(%arg0: i32, %arg1: i32) -> (i32, i32) {
    %c0_i32 = arith.constant 0 : i32
    return %arg0, %arg1 : i32, i32
  }
}

</mosaic_0001>

<llo_original>
// kernel: transformer_block_forward.5
$region0: #{transformer_block_forward.5}
  #allocation0 [shape = 'u32[]', space=smem, size = 0x4, offset = 0x4, fixed_abs, tag = 'smem constant byte address 0x4 - core index']
  #allocation1 [shape = 'u32[144,128]{1,0:T(1,128)}', space=vmem, size = 0x12000, scoped, tag = 'internal scratch']
  %s0 = inlined_call_operand.vmem [shape: f32[16,32], index: 0, kind: input, shape index: {}]
  %s1 = inlined_call_operand.hbm [shape: f32[1,32], index: 1, kind: input, shape index: {}]
  %s2 = inlined_call_operand.hbm [shape: f32[32,96], index: 2, kind: input, shape index: {}]
  %s3 = inlined_call_operand.vmem [shape: f32[16,96], index: 3, kind: output, shape index: {}]
  %s4 = sld [smem:[#allocation0]]
  $region30: #{transformer_block_forward.5} parent=0
    _
  %s6 = ssub.s32 1, %s4
  %s7 = scalar_select 0, %s6, %s4
  $region1: #{transformer_block_forward.5} parent=0
    #allocation2 [shape = 'u8[512]{0}', space=vmem, size = 0x400, scoped, tag = 'input window, operand 1, single buffered']
    #allocation3 [shape = 's32[1]{0}', space=sflag, size = 0x4, scoped, tag = 'scoped memory for transformer_block_forward.5']
    #allocation4 [shape = 'u8[16384]{0}', space=vmem, size = 0x4000, scoped, tag = 'input window, operand 2, single buffered']
    #allocation5 [shape = 's32[1]{0}', space=sflag, size = 0x4, scoped, tag = 'scoped memory for transformer_block_forward.5']
    %8 = vsyncpa [#allocation3], 0
    %9 = vsyncpa [#allocation5], 0
    // Predicated region
    $region2: #{transformer_block_forward.5} parent=1 // pred_check
      _
    $region3: #{transformer_block_forward.5} parent=1 // pred_check_branch
      %11 = sbr.rel (0) target = $region5
    $region4: #{transformer_block_forward.5} parent=1 // pred_region
      _
    $region5: #{transformer_block_forward.5} parent=1 // pred_fallthru
      _
    // Predicated region
    $region6: #{transformer_block_forward.5} parent=1 // pred_check
      _
    $region7: #{transformer_block_forward.5} parent=1 // pred_check_branch
      %13 = sbr.rel (0) target = $region9
    $region8: #{transformer_block_forward.5} parent=1 // pred_region
      %s15 = ssub.s32 16, 16
      %16 = vsyncadd [#allocation3], %s15
      %s18 = sshll.u32 [#allocation2], 4
      %s19 = int_to_ptr.vmem [resolvable:$true] %s18
      %21 = dma.hbm_to_vmem [thread:$0]  %s1, 16, %s19, [#allocation3]
    $region9: #{transformer_block_forward.5} parent=1 // pred_fallthru
      _
    // Predicated region
    $region10: #{transformer_block_forward.5} parent=1 // pred_check
      _
    $region11: #{transformer_block_forward.5} parent=1 // pred_check_branch
      %23 = sbr.rel (0) target = $region13
    $region12: #{transformer_block_forward.5} parent=1 // pred_region
      %s25 = ssub.s32 512, 512
      %26 = vsyncadd [#allocation5], %s25
      %s27 = sshll.u32 [#allocation4], 4
      %s28 = int_to_ptr.vmem [resolvable:$true] %s27
      %33 = dma.hbm_to_vmem [thread:$0]  %s2, 512, %s28, [#allocation5], 128, 128, 8
    $region13: #{transformer_block_forward.5} parent=1 // pred_fallthru
      _
    // Predicated region
    $region14: #{transformer_block_forward.5} parent=1 // pred_check
      _
    $region15: #{transformer_block_forward.5} parent=1 // pred_check_branch
      %35 = sbr.rel (0) target = $region17
    $region16: #{transformer_block_forward.5} parent=1 // pred_region
      %36 = dma.done [#allocation3], 16
    $region17: #{transformer_block_forward.5} parent=1 // pred_fallthru
      _
    // Predicated region
    $region18: #{transformer_block_forward.5} parent=1 // pred_check
      _
    $region19: #{transformer_block_forward.5} parent=1 // pred_check_branch
      %38 = sbr.rel (0) target = $region21
    $region20: #{transformer_block_forward.5} parent=1 // pred_region
      %39 = dma.done [#allocation5], 512
    $region21: #{transformer_block_forward.5} parent=1 // pred_fallthru
      _
    %v40 = vld [vmem:[%s0] sm:$0xff]
    %v41 = vld [vmem:[%s0 + $0x8] sm:$0xff]
    %v42 = vmul.f32 %v40, %v40
    %v43 = vmul.f32 %v41, %v41
    %vm44 = vcmask 261120
    %v45 = vsel %vm44, %v42, 0.0
    %46 = vadd.xlane.f32.xlu0 %v45
    %v47 = vpop.xlane.xlu0 %46
    %v48 = vsel %vm44, %v43, 0.0
    %49 = vadd.xlane.f32.xlu0 %v48
    %v50 = vpop.xlane.xlu0 %49
    %v51 = vrcp.pop 32.0
    %v52 = vmul.f32 %v47, %v51
    %v53 = vmul.f32 %v50, %v51
    %v54 = vadd.f32 %v52, 1e-06
    %v55 = vadd.f32 %v53, 1e-06
    %v56 = vrsqrt.pop %v54
    %v57 = vrsqrt.pop %v55
    %v58 = vmul.f32 %v40, %v56
    %v59 = vmul.f32 %v41, %v57
    %v60 = vld [vmem:[#allocation2] sm:$0x1]
    %v62 = vlaneseq
    %v63 = vshrl.u32 %v62, 7
    %v64 = vsub.s32 0, %v63
    %v65 = vrot.slane %v60, %v64
    %v67 = vmul.f32 %v58, %v65
    %v68 = vmul.f32 %v59, %v65
    %v69 = vld [vmem:[#allocation4] sm:$0xff]
    %v70 = vld [vmem:[#allocation4 + $0x8] sm:$0xff]
    %v71 = vld [vmem:[#allocation4 + $0x10] sm:$0xff]
    %v72 = vld [vmem:[#allocation4 + $0x18] sm:$0xff]
    %v74 = vsel %vm44, %v67, 0
    %v77 = vsel %vm44, %v68, 0
    %79 = vmatprep.subr.mxu0 0.0
    %80 = vmatpush1.msra.mxu0 0.0
    %81 = vmatprep.subr.mxu0 0.0
    %82 = vmatpush1.msra.mxu0 0.0
    %83 = vmatprep.subr.mxu0 0.0
    %84 = vmatpush1.msra.mxu0 0.0
    %85 = vmatprep.subr.mxu0 0.0
    %86 = vmatpush1.msra.mxu0 0.0
    %87 = vmatprep.subr.mxu0 0.0
    %88 = vmatpush1.msra.mxu0 0.0
    %89 = vmatprep.subr.mxu0 0.0
    %90 = vmatpush1.msra.mxu0 0.0
    %91 = vmatprep.subr.mxu0 0.0
    %92 = vmatpush1.msra.mxu0 0.0
    %93 = vmatprep.subr.mxu0 0.0
    %94 = vmatpush1.msra.mxu0 0.0
    %95 = vmatprep.subr.mxu0 0.0
    %96 = vmatpush1.msra.mxu0 0.0
    %97 = vmatprep.subr.mxu0 0.0
    %98 = vmatpush1.msra.mxu0 0.0
    %99 = vmatprep.subr.mxu0 0.0
    %100 = vmatpush1.msra.mxu0 0.0
    %101 = vmatprep.subr.mxu0 0.0
    %102 = vmatpush1.msra.mxu0 0.0
    %103 = vmatprep.subr.mxu0 0.0
    %104 = vmatpush1.msra.mxu0 %v72
    %105 = vmatprep.subr.mxu0 0.0
    %106 = vmatpush1.msra.mxu0 %v71
    %107 = vmatprep.subr.mxu0 0.0
    %108 = vmatpush1.msra.mxu0 %v70
    %109 = vmatprep.subr.mxu0 0.0
    %110 = vmatpush1.msra.mxu0 %v69
    %111 = vmatprep.subr.mxu0 0.0
    %112 = vmatpush2.msra.mxu0 0.0
    %113 = vmatprep.subr.mxu0 0.0
    %114 = vmatpush2.msra.mxu0 0.0
    %115 = vmatprep.subr.mxu0 0.0
    %116 = vmatpush2.msra.mxu0 0.0
    %117 = vmatprep.subr.mxu0 0.0
    %118 = vmatpush2.msra.mxu0 0.0
    %119 = vmatprep.subr.mxu0 0.0
    %120 = vmatpush2.msra.mxu0 0.0
    %121 = vmatprep.subr.mxu0 0.0
    %122 = vmatpush2.msra.mxu0 0.0
    %123 = vmatprep.subr.mxu0 0.0
    %124 = vmatpush2.msra.mxu0 0.0
    %125 = vmatprep.subr.mxu0 0.0
    %126 = vmatpush2.msra.mxu0 0.0
    %127 = vmatprep.subr.mxu0 0.0
    %128 = vmatpush2.msra.mxu0 0.0
    %129 = vmatprep.subr.mxu0 0.0
    %130 = vmatpush2.msra.mxu0 0.0
    %131 = vmatprep.subr.mxu0 0.0
    %132 = vmatpush2.msra.mxu0 0.0
    %133 = vmatprep.subr.mxu0 0.0
    %134 = vmatpush2.msra.mxu0 0.0
    %135 = vmatprep.subr.mxu0 0.0
    %136 = vmatpush2.msra.mxu0 0.0
    %137 = vmatprep.subr.mxu0 0.0
    %138 = vmatpush2.msra.mxu0 0.0
    %139 = vmatprep.subr.mxu0 0.0
    %140 = vmatpush2.msra.mxu0 0.0
    %141 = vmatprep.subr.mxu0 0.0
    %142 = vmatpush2.msra.mxu0 0.0
    %143 = vmatprep.mubr.f32.mxu0 0.0
    %144 = vmatmul.mubr.f32.gmra.mxu0 %v74
    %v145 = vpop.f32.mrf.mxu0
    %v146 = vadd.f32 0.0, %v145
    %v147 = vpop.f32.mrf.mxu0
    %148 = vmatprep.mubr.f32.mxu0 0.0
    %149 = vmatmul.mubr.f32.gmra.mxu0 %v77
    %v150 = vpop.f32.mrf.mxu0
    %v151 = vadd.f32 0.0, %v150
    %v152 = vpop.f32.mrf.mxu0
    %153 = vdwg.mxu0
    %vm154 = vcmask 785408
    %155 = vst.msk [vmem:[%s3] sm:$0xff] %vm154, %v146
    %156 = vst.msk [vmem:[%s3 + $0x8] sm:$0xff] %vm154, %v151
    // Predicated region
    $region22: #{transformer_block_forward.5} parent=1 // pred_check
      _
    $region23: #{transformer_block_forward.5} parent=1 // pred_check_branch
      %158 = sbr.rel (0) target = $region25
    $region24: #{transformer_block_forward.5} parent=1 // pred_region
      _
    $region25: #{transformer_block_forward.5} parent=1 // pred_fallthru
      _
    // Predicated region
    $region26: #{transformer_block_forward.5} parent=1 // pred_check
      _
    $region27: #{transformer_block_forward.5} parent=1 // pred_check_branch
      %160 = sbr.rel (0) target = $region29
    $region28: #{transformer_block_forward.5} parent=1 // pred_region
      _
    $region29: #{transformer_block_forward.5} parent=1 // pred_fallthru
      _
    %161 = vsyncpa [#allocation3], 1
    %162 = vsyncpa [#allocation5], 1

// kernel: transformer_block_forward.7
$region0: #{transformer_block_forward.7}
  #allocation0 [shape = 'u32[]', space=smem, size = 0x4, offset = 0x4, fixed_abs, tag = 'smem constant byte address 0x4 - core index']
  #allocation1 [shape = 'u32[144,128]{1,0:T(1,128)}', space=vmem, size = 0x12000, scoped, tag = 'internal scratch']
  #allocation2 [shape = 'f32[16,32]{1,0:T(8,128)}', space=vmem, size = 0x2000, scoped, tag = 'scratch operand']
  %s0 = inlined_call_operand.vmem [shape: f32[16,32], index: 0, kind: input, shape index: {}]
  %s1 = inlined_call_operand.vmem [shape: f32[32,32], index: 1, kind: input, shape index: {}]
  %s2 = inlined_call_operand.vmem [shape: f32[16,32], index: 2, kind: input, shape index: {}]
  %s3 = inlined_call_operand.vmem [shape: f32[16,32], index: 3, kind: output, shape index: {}]
  %s4 = sld [smem:[#allocation0]]
  $region30: #{transformer_block_forward.7} parent=0
    _
  %s6 = ssub.s32 1, %s4
  %s7 = scalar_select 0, %s6, %s4
  // Predicated region
  $region2: #{transformer_block_forward.7} parent=0 // pred_check
    _
  $region3: #{transformer_block_forward.7} parent=0 // pred_check_branch
    %9 = sbr.rel (0) target = $region5
  $region4: #{transformer_block_forward.7} parent=0 // pred_region
    _
  $region5: #{transformer_block_forward.7} parent=0 // pred_fallthru
    _
  // Predicated region
  $region6: #{transformer_block_forward.7} parent=0 // pred_check
    _
  $region7: #{transformer_block_forward.7} parent=0 // pred_check_branch
    %11 = sbr.rel (0) target = $region9
  $region8: #{transformer_block_forward.7} parent=0 // pred_region
    _
  $region9: #{transformer_block_forward.7} parent=0 // pred_fallthru
    _
  // Predicated region
  $region10: #{transformer_block_forward.7} parent=0 // pred_check
    _
  $region11: #{transformer_block_forward.7} parent=0 // pred_check_branch
    %13 = sbr.rel (0) target = $region13
  $region12: #{transformer_block_forward.7} parent=0 // pred_region
    _
  $region13: #{transformer_block_forward.7} parent=0 // pred_fallthru
    _
  %p14 = scmp.eq.s32.totalorder 0, 0
  // Predicated region
  $region14: #{transformer_block_forward.7} parent=0 // pred_check
    %p15 = pneg %p14
  $region15: #{transformer_block_forward.7} parent=0 // pred_check_branch
    %17 = sbr.rel (%p15) target = $region17
  $region16: #{transformer_block_forward.7} parent=0 // pred_region
    %vm18 = vcmask 261120
    %19 = vst.msk [vmem:[#allocation2] sm:$0xff] %vm18, 0.0
    %20 = vst.msk [vmem:[#allocation2 + $0x8] sm:$0xff] %vm18, 0.0
  $region17: #{transformer_block_forward.7} parent=0 // pred_fallthru
    _
  %v21 = vld [vmem:[#allocation2] sm:$0xff]
  %v22 = vld [vmem:[#allocation2 + $0x8] sm:$0xff]
  %v23 = vld [vmem:[%s0] sm:$0xff]
  %v24 = vld [vmem:[%s0 + $0x8] sm:$0xff]
  %v25 = vld [vmem:[%s1] sm:$0xff]
  %v26 = vld [vmem:[%s1 + $0x8] sm:$0xff]
  %v27 = vld [vmem:[%s1 + $0x10] sm:$0xff]
  %v28 = vld [vmem:[%s1 + $0x18] sm:$0xff]
  %vm29 = vcmask 261120
  %v31 = vsel %vm29, %v23, 0
  %v34 = vsel %vm29, %v24, 0
  %36 = vmatprep.subr.mxu0 0.0
  %37 = vmatpush1.msra.mxu0 0.0
  %38 = vmatprep.subr.mxu0 0.0
  %39 = vmatpush1.msra.mxu0 0.0
  %40 = vmatprep.subr.mxu0 0.0
  %41 = vmatpush1.msra.mxu0 0.0
  %42 = vmatprep.subr.mxu0 0.0
  %43 = vmatpush1.msra.mxu0 0.0
  %44 = vmatprep.subr.mxu0 0.0
  %45 = vmatpush1.msra.mxu0 0.0
  %46 = vmatprep.subr.mxu0 0.0
  %47 = vmatpush1.msra.mxu0 0.0
  %48 = vmatprep.subr.mxu0 0.0
  %49 = vmatpush1.msra.mxu0 0.0
  %50 = vmatprep.subr.mxu0 0.0
  %51 = vmatpush1.msra.mxu0 0.0
  %52 = vmatprep.subr.mxu0 0.0
  %53 = vmatpush1.msra.mxu0 0.0
  %54 = vmatprep.subr.mxu0 0.0
  %55 = vmatpush1.msra.mxu0 0.0
  %56 = vmatprep.subr.mxu0 0.0
  %57 = vmatpush1.msra.mxu0 0.0
  %58 = vmatprep.subr.mxu0 0.0
  %59 = vmatpush1.msra.mxu0 0.0
  %60 = vmatprep.subr.mxu0 0.0
  %61 = vmatpush1.msra.mxu0 %v28
  %62 = vmatprep.subr.mxu0 0.0
  %63 = vmatpush1.msra.mxu0 %v27
  %64 = vmatprep.subr.mxu0 0.0
  %65 = vmatpush1.msra.mxu0 %v26
  %66 = vmatprep.subr.mxu0 0.0
  %67 = vmatpush1.msra.mxu0 %v25
  %68 = vmatprep.subr.mxu0 0.0
  %69 = vmatpush2.msra.mxu0 0.0
  %70 = vmatprep.subr.mxu0 0.0
  %71 = vmatpush2.msra.mxu0 0.0
  %72 = vmatprep.subr.mxu0 0.0
  %73 = vmatpush2.msra.mxu0 0.0
  %74 = vmatprep.subr.mxu0 0.0
  %75 = vmatpush2.msra.mxu0 0.0
  %76 = vmatprep.subr.mxu0 0.0
  %77 = vmatpush2.msra.mxu0 0.0
  %78 = vmatprep.subr.mxu0 0.0
  %79 = vmatpush2.msra.mxu0 0.0
  %80 = vmatprep.subr.mxu0 0.0
  %81 = vmatpush2.msra.mxu0 0.0
  %82 = vmatprep.subr.mxu0 0.0
  %83 = vmatpush2.msra.mxu0 0.0
  %84 = vmatprep.subr.mxu0 0.0
  %85 = vmatpush2.msra.mxu0 0.0
  %86 = vmatprep.subr.mxu0 0.0
  %87 = vmatpush2.msra.mxu0 0.0
  %88 = vmatprep.subr.mxu0 0.0
  %89 = vmatpush2.msra.mxu0 0.0
  %90 = vmatprep.subr.mxu0 0.0
  %91 = vmatpush2.msra.mxu0 0.0
  %92 = vmatprep.subr.mxu0 0.0
  %93 = vmatpush2.msra.mxu0 0.0
  %94 = vmatprep.subr.mxu0 0.0
  %95 = vmatpush2.msra.mxu0 0.0
  %96 = vmatprep.subr.mxu0 0.0
  %97 = vmatpush2.msra.mxu0 0.0
  %98 = vmatprep.subr.mxu0 0.0
  %99 = vmatpush2.msra.mxu0 0.0
  %100 = vmatprep.mubr.f32.mxu0 0.0
  %101 = vmatmul.mubr.f32.gmra.mxu0 %v31
  %v102 = vpop.f32.mrf.mxu0
  %v103 = vadd.f32 0.0, %v102
  %v104 = vpop.f32.mrf.mxu0
  %105 = vmatprep.mubr.f32.mxu0 0.0
  %106 = vmatmul.mubr.f32.gmra.mxu0 %v34
  %v107 = vpop.f32.mrf.mxu0
  %v108 = vadd.f32 0.0, %v107
  %v109 = vpop.f32.mrf.mxu0
  %110 = vdwg.mxu0
  %v111 = vadd.f32 %v21, %v103
  %v112 = vadd.f32 %v22, %v108
  %113 = vst.msk [vmem:[#allocation2] sm:$0xff] %vm29, %v111
  %114 = vst.msk [vmem:[#allocation2 + $0x8] sm:$0xff] %vm29, %v112
  // Predicated region
  $region18: #{transformer_block_forward.7} parent=0 // pred_check
    %p115 = pneg %p14
  $region19: #{transformer_block_forward.7} parent=0 // pred_check_branch
    %117 = sbr.rel (%p115) target = $region21
  $region20: #{transformer_block_forward.7} parent=0 // pred_region
    %v118 = vld [vmem:[#allocation2] sm:$0xff]
    %v119 = vld [vmem:[#allocation2 + $0x8] sm:$0xff]
    %v120 = vld [vmem:[%s2] sm:$0xff]
    %v121 = vld [vmem:[%s2 + $0x8] sm:$0xff]
    %v122 = vadd.f32 %v118, %v120
    %v123 = vadd.f32 %v119, %v121
    %124 = vst.msk [vmem:[%s3] sm:$0xff] %vm29, %v122
    %125 = vst.msk [vmem:[%s3 + $0x8] sm:$0xff] %vm29, %v123
  $region21: #{transformer_block_forward.7} parent=0 // pred_fallthru
    _
  // Predicated region
  $region22: #{transformer_block_forward.7} parent=0 // pred_check
    _
  $region23: #{transformer_block_forward.7} parent=0 // pred_check_branch
    %127 = sbr.rel (0) target = $region25
  $region24: #{transformer_block_forward.7} parent=0 // pred_region
    _
  $region25: #{transformer_block_forward.7} parent=0 // pred_fallthru
    _
  // Predicated region
  $region26: #{transformer_block_forward.7} parent=0 // pred_check
    _
  $region27: #{transformer_block_forward.7} parent=0 // pred_check_branch
    %129 = sbr.rel (0) target = $region29
  $region28: #{transformer_block_forward.7} parent=0 // pred_region
    _
  $region29: #{transformer_block_forward.7} parent=0 // pred_fallthru
    _

// kernel: transformer_block_forward.8
$region0: #{transformer_block_forward.8}
  #allocation0 [shape = 'u32[]', space=smem, size = 0x4, offset = 0x4, fixed_abs, tag = 'smem constant byte address 0x4 - core index']
  #allocation1 [shape = 'u32[144,128]{1,0:T(1,128)}', space=vmem, size = 0x12000, scoped, tag = 'internal scratch']
  %s0 = inlined_call_operand.vmem [shape: f32[16,32], index: 0, kind: input, shape index: {}]
  %s1 = inlined_call_operand.vmem [shape: f32[1,32], index: 1, kind: input, shape index: {}]
  %s2 = inlined_call_operand.vmem [shape: f32[32,256], index: 2, kind: input, shape index: {}]
  %s3 = inlined_call_operand.vmem [shape: f32[16,256], index: 3, kind: output, shape index: {}]
  %s4 = sld [smem:[#allocation0]]
  $region22: #{transformer_block_forward.8} parent=0
    _
  %s6 = ssub.s32 1, %s4
  %s7 = scalar_select 0, %s6, %s4
  // Predicated region
  $region2: #{transformer_block_forward.8} parent=0 // pred_check
    _
  $region3: #{transformer_block_forward.8} parent=0 // pred_check_branch
    %9 = sbr.rel (0) target = $region5
  $region4: #{transformer_block_forward.8} parent=0 // pred_region
    _
  $region5: #{transformer_block_forward.8} parent=0 // pred_fallthru
    _
  // Predicated region
  $region6: #{transformer_block_forward.8} parent=0 // pred_check
    _
  $region7: #{transformer_block_forward.8} parent=0 // pred_check_branch
    %11 = sbr.rel (0) target = $region9
  $region8: #{transformer_block_forward.8} parent=0 // pred_region
    _
  $region9: #{transformer_block_forward.8} parent=0 // pred_fallthru
    _
  // Predicated region
  $region10: #{transformer_block_forward.8} parent=0 // pred_check
    _
  $region11: #{transformer_block_forward.8} parent=0 // pred_check_branch
    %13 = sbr.rel (0) target = $region13
  $region12: #{transformer_block_forward.8} parent=0 // pred_region
    _
  $region13: #{transformer_block_forward.8} parent=0 // pred_fallthru
    _
  %v14 = vld [vmem:[%s0] sm:$0xff]
  %v15 = vld [vmem:[%s0 + $0x8] sm:$0xff]
  %v16 = vmul.f32 %v14, %v14
  %v17 = vmul.f32 %v15, %v15
  %vm18 = vcmask 261120
  %v19 = vsel %vm18, %v16, 0.0
  %20 = vadd.xlane.f32.xlu0 %v19
  %v21 = vpop.xlane.xlu0 %20
  %v22 = vsel %vm18, %v17, 0.0
  %23 = vadd.xlane.f32.xlu0 %v22
  %v24 = vpop.xlane.xlu0 %23
  %v25 = vrcp.pop 32.0
  %v26 = vmul.f32 %v21, %v25
  %v27 = vmul.f32 %v24, %v25
  %v28 = vadd.f32 %v26, 1e-06
  %v29 = vadd.f32 %v27, 1e-06
  %v30 = vrsqrt.pop %v28
  %v31 = vrsqrt.pop %v29
  %v32 = vmul.f32 %v14, %v30
  %v33 = vmul.f32 %v15, %v31
  %v34 = vld [vmem:[%s1] sm:$0x1]
  %v36 = vlaneseq
  %v37 = vshrl.u32 %v36, 7
  %v38 = vsub.s32 0, %v37
  %v39 = vrot.slane %v34, %v38
  %v41 = vmul.f32 %v32, %v39
  %v42 = vmul.f32 %v33, %v39
  %v43 = vld [vmem:[%s2] sm:$0xff]
  %v44 = vld [vmem:[%s2 + $0x8] sm:$0xff]
  %v45 = vld [vmem:[%s2 + $0x10] sm:$0xff]
  %v46 = vld [vmem:[%s2 + $0x18] sm:$0xff]
  %v47 = vld [vmem:[%s2 + $0x20] sm:$0xff]
  %v48 = vld [vmem:[%s2 + $0x28] sm:$0xff]
  %v49 = vld [vmem:[%s2 + $0x30] sm:$0xff]
  %v50 = vld [vmem:[%s2 + $0x38] sm:$0xff]
  %v52 = vsel %vm18, %v41, 0
  %v55 = vsel %vm18, %v42, 0
  %57 = vmatprep.subr.mxu0 0.0
  %58 = vmatpush1.msra.mxu0 0.0
  %59 = vmatprep.subr.mxu0 0.0
  %60 = vmatpush1.msra.mxu0 0.0
  %61 = vmatprep.subr.mxu0 0.0
  %62 = vmatpush1.msra.mxu0 0.0
  %63 = vmatprep.subr.mxu0 0.0
  %64 = vmatpush1.msra.mxu0 0.0
  %65 = vmatprep.subr.mxu0 0.0
  %66 = vmatpush1.msra.mxu0 0.0
  %67 = vmatprep.subr.mxu0 0.0
  %68 = vmatpush1.msra.mxu0 0.0
  %69 = vmatprep.subr.mxu0 0.0
  %70 = vmatpush1.msra.mxu0 0.0
  %71 = vmatprep.subr.mxu0 0.0
  %72 = vmatpush1.msra.mxu0 0.0
  %73 = vmatprep.subr.mxu0 0.0
  %74 = vmatpush1.msra.mxu0 0.0
  %75 = vmatprep.subr.mxu0 0.0
  %76 = vmatpush1.msra.mxu0 0.0
  %77 = vmatprep.subr.mxu0 0.0
  %78 = vmatpush1.msra.mxu0 0.0
  %79 = vmatprep.subr.mxu0 0.0
  %80 = vmatpush1.msra.mxu0 0.0
  %81 = vmatprep.subr.mxu0 %v50
  %82 = vmatpush1.msra.mxu0 %v49
  %83 = vmatprep.subr.mxu0 %v48
  %84 = vmatpush1.msra.mxu0 %v47
  %85 = vmatprep.subr.mxu0 %v46
  %86 = vmatpush1.msra.mxu0 %v45
  %87 = vmatprep.subr.mxu0 %v44
  %88 = vmatpush1.msra.mxu0 %v43
  %89 = vmatprep.subr.mxu0 0.0
  %90 = vmatpush2.msra.mxu0 0.0
  %91 = vmatprep.subr.mxu0 0.0
  %92 = vmatpush2.msra.mxu0 0.0
  %93 = vmatprep.subr.mxu0 0.0
  %94 = vmatpush2.msra.mxu0 0.0
  %95 = vmatprep.subr.mxu0 0.0
  %96 = vmatpush2.msra.mxu0 0.0
  %97 = vmatprep.subr.mxu0 0.0
  %98 = vmatpush2.msra.mxu0 0.0
  %99 = vmatprep.subr.mxu0 0.0
  %100 = vmatpush2.msra.mxu0 0.0
  %101 = vmatprep.subr.mxu0 0.0
  %102 = vmatpush2.msra.mxu0 0.0
  %103 = vmatprep.subr.mxu0 0.0
  %104 = vmatpush2.msra.mxu0 0.0
  %105 = vmatprep.subr.mxu0 0.0
  %106 = vmatpush2.msra.mxu0 0.0
  %107 = vmatprep.subr.mxu0 0.0
  %108 = vmatpush2.msra.mxu0 0.0
  %109 = vmatprep.subr.mxu0 0.0
  %110 = vmatpush2.msra.mxu0 0.0
  %111 = vmatprep.subr.mxu0 0.0
  %112 = vmatpush2.msra.mxu0 0.0
  %113 = vmatprep.subr.mxu0 0.0
  %114 = vmatpush2.msra.mxu0 0.0
  %115 = vmatprep.subr.mxu0 0.0
  %116 = vmatpush2.msra.mxu0 0.0
  %117 = vmatprep.subr.mxu0 0.0
  %118 = vmatpush2.msra.mxu0 0.0
  %119 = vmatprep.subr.mxu0 0.0
  %120 = vmatpush2.msra.mxu0 0.0
  %121 = vmatprep.mubr.f32.mxu0 0.0
  %122 = vmatmul.mubr.f32.gmra.mxu0 %v52
  %v123 = vpop.f32.mrf.mxu0
  %v124 = vadd.f32 0.0, %v123
  %v125 = vpop.f32.mrf.mxu0
  %v126 = vadd.f32 0.0, %v125
  %127 = vmatprep.mubr.f32.mxu0 0.0
  %128 = vmatmul.mubr.f32.gmra.mxu0 %v55
  %v129 = vpop.f32.mrf.mxu0
  %v130 = vadd.f32 0.0, %v129
  %v131 = vpop.f32.mrf.mxu0
  %v132 = vadd.f32 0.0, %v131
  %133 = vdwg.mxu0
  %134 = vst [vmem:[%s3] sm:$0xff] %v124
  %135 = vst [vmem:[%s3 + $0x8] sm:$0xff] %v126
  %136 = vst [vmem:[%s3 + $0x10] sm:$0xff] %v130
  %137 = vst [vmem:[%s3 + $0x18] sm:$0xff] %v132
  // Predicated region
  $region14: #{transformer_block_forward.8} parent=0 // pred_check
    _
  $region15: #{transformer_block_forward.8} parent=0 // pred_check_branch
    %139 = sbr.rel (0) target = $region17
  $region16: #{transformer_block_forward.8} parent=0 // pred_region
    _
  $region17: #{transformer_block_forward.8} parent=0 // pred_fallthru
    _
  // Predicated region
  $region18: #{transformer_block_forward.8} parent=0 // pred_check
    _
  $region19: #{transformer_block_forward.8} parent=0 // pred_check_branch
    %141 = sbr.rel (0) target = $region21
  $region20: #{transformer_block_forward.8} parent=0 // pred_region
    _
  $region21: #{transformer_block_forward.8} parent=0 // pred_fallthru
    _

// kernel: transformer_block_forward.9
$region0: #{transformer_block_forward.9}
  #allocation0 [shape = 'u32[]', space=smem, size = 0x4, offset = 0x4, fixed_abs, tag = 'smem constant byte address 0x4 - core index']
  #allocation1 [shape = 'u32[144,128]{1,0:T(1,128)}', space=vmem, size = 0x12000, scoped, tag = 'internal scratch']
  %s0 = inlined_call_operand.vmem [shape: f32[16,256], index: 0, kind: input, shape index: {}, may-alias: {0,1}]
  %s1 = inlined_call_operand.vmem [shape: f32[16,256], index: 1, kind: input, shape index: {}, may-alias: {0,1}]
  %s2 = inlined_call_operand.vmem [shape: f32[128,32], index: 2, kind: input, shape index: {}]
  %s3 = inlined_call_operand.vmem [shape: f32[16,32], index: 3, kind: input, shape index: {}]
  %s4 = inlined_call_operand.hbm [shape: f32[16,32], index: 4, kind: output, shape index: {}]
  %s5 = sld [smem:[#allocation0]]
  $region102: #{transformer_block_forward.9} parent=0
    _
  %s7 = ssub.s32 1, %s5
  %s8 = scalar_select 0, %s7, %s5
  $region1: #{transformer_block_forward.9} parent=0
    #allocation2 [shape = 'u8[8192]{0}', space=vmem, size = 0x2000, scoped, tag = 'input window, operand 0, single buffered']
    #allocation3 [shape = 'u8[8192]{0}', space=vmem, size = 0x2000, scoped, tag = 'input window, operand 1, single buffered']
    #allocation4 [shape = 'u8[8192]{0}', space=vmem, size = 0x2000, scoped, tag = 'output window, operand 0, single buffered']
    #allocation5 [shape = 's32[1]{0}', space=sflag, size = 0x4, scoped, tag = 'scoped memory for transformer_block_forward.9']
    %9 = vsyncpa [#allocation5], 0
    // Predicated region
    $region2: #{transformer_block_forward.9} parent=1 // pred_check
      _
    $region3: #{transformer_block_forward.9} parent=1 // pred_check_branch
      %11 = sbr.rel (0) target = $region5
    $region4: #{transformer_block_forward.9} parent=1 // pred_region
      // Predicated region
      $region6: #{transformer_block_forward.9} parent=4 // pred_check
        _
      $region7: #{transformer_block_forward.9} parent=4 // pred_check_branch
        %13 = sbr.rel (0) target = $region9
      $region8: #{transformer_block_forward.9} parent=4 // pred_region
        // Predicated region
        $region10: #{transformer_block_forward.9} parent=8 // pred_check
          _
        $region11: #{transformer_block_forward.9} parent=8 // pred_check_branch
          %15 = sbr.rel (0) target = $region13
        $region12: #{transformer_block_forward.9} parent=8 // pred_region
          // Predicated region
          $region25: #{transformer_block_forward.9} parent=12 // pred_check
            _
          $region26: #{transformer_block_forward.9} parent=12 // pred_check_branch
            %33 = sbr.rel (0) target = $region28
          $region27: #{transformer_block_forward.9} parent=12 // pred_region
            loop: start=0, step=1, limit=1
            $region29: #{transformer_block_forward.9} parent=27 // loop_pre_header
              _
            $region30: #{transformer_block_forward.9} parent=27 // loop_header
              %s35 = sphi 0, %s39
              %p36 = scmp.ge.s32.totalorder %s35, 1
              %s40 = sphi %s0, %s0
              %s41 = sphi [#allocation2], [#allocation2]
            $region31: #{transformer_block_forward.9} parent=27 // loop_header_branch
              %38 = sbr.rel (%p36) target = $region35
            $region32: #{transformer_block_forward.9} parent=27 // loop_body
              %v42 = vld [vmem:[%s40] sm:$0xff]
              %43 = vst [vmem:[%s41] sm:$0xff] %v42
              %v44 = vld [vmem:[%s40 + $0x10] sm:$0xff]
              %45 = vst [vmem:[%s41 + $0x8] sm:$0xff] %v44
            $region33: #{transformer_block_forward.9} parent=27 // loop_footer
              %s39 = sadd.s32 1, %s35
            $region34: #{transformer_block_forward.9} parent=27 // loop_footer_branch
              %34 = sbr.rel target = $region30
            $region35: #{transformer_block_forward.9} parent=27 // loop_exit
              _
          $region28: #{transformer_block_forward.9} parent=12 // pred_fallthru
            _
          // Predicated region
          $region36: #{transformer_block_forward.9} parent=12 // pred_check
            _
          $region37: #{transformer_block_forward.9} parent=12 // pred_check_branch
            %47 = sbr.rel target = $region39
          $region38: #{transformer_block_forward.9} parent=12 // pred_region
            _
          $region39: #{transformer_block_forward.9} parent=12 // pred_fallthru
            _
        $region13: #{transformer_block_forward.9} parent=8 // pred_fallthru
          _
        // Predicated region
        $region14: #{transformer_block_forward.9} parent=8 // pred_check
          _
        $region15: #{transformer_block_forward.9} parent=8 // pred_check_branch
          %17 = sbr.rel target = $region17
        $region16: #{transformer_block_forward.9} parent=8 // pred_region
          %s19 = ssub.s32 256, 1
          loop: start=0, step=1, limit=1
          $region18: #{transformer_block_forward.9} parent=16 // loop_pre_header
            _
          $region19: #{transformer_block_forward.9} parent=16 // loop_header
            %s21 = sphi 0, %s25
            %p22 = scmp.ge.s32.totalorder %s21, 1
            %s26 = sphi %s0, %s0
            %s27 = sphi [#allocation2], [#allocation2]
          $region20: #{transformer_block_forward.9} parent=16 // loop_header_branch
            %24 = sbr.rel (%p22) target = $region24
          $region21: #{transformer_block_forward.9} parent=16 // loop_body
            %v28 = vld [vmem:[%s26] sm:%s19]
            %29 = vst [vmem:[%s27] sm:%s19] %v28
            %v30 = vld [vmem:[%s26 + $0x10] sm:%s19]
            %31 = vst [vmem:[%s27 + $0x8] sm:%s19] %v30
          $region22: #{transformer_block_forward.9} parent=16 // loop_footer
            %s25 = sadd.s32 1, %s21
          $region23: #{transformer_block_forward.9} parent=16 // loop_footer_branch
            %20 = sbr.rel target = $region19
          $region24: #{transformer_block_forward.9} parent=16 // loop_exit
            _
        $region17: #{transformer_block_forward.9} parent=8 // pred_fallthru
          _
      $region9: #{transformer_block_forward.9} parent=4 // pred_fallthru
        _
      %48 = vnop
    $region5: #{transformer_block_forward.9} parent=1 // pred_fallthru
      _
    // Predicated region
    $region40: #{transformer_block_forward.9} parent=1 // pred_check
      _
    $region41: #{transformer_block_forward.9} parent=1 // pred_check_branch
      %50 = sbr.rel (0) target = $region43
    $region42: #{transformer_block_forward.9} parent=1 // pred_region
      %s51 = scalar_lea.vmem %s1, 8
      // Predicated region
      $region44: #{transformer_block_forward.9} parent=42 // pred_check
        _
      $region45: #{transformer_block_forward.9} parent=42 // pred_check_branch
        %53 = sbr.rel (0) target = $region47
      $region46: #{transformer_block_forward.9} parent=42 // pred_region
        // Predicated region
        $region48: #{transformer_block_forward.9} parent=46 // pred_check
          _
        $region49: #{transformer_block_forward.9} parent=46 // pred_check_branch
          %55 = sbr.rel (0) target = $region51
        $region50: #{transformer_block_forward.9} parent=46 // pred_region
          // Predicated region
          $region63: #{transformer_block_forward.9} parent=50 // pred_check
            _
          $region64: #{transformer_block_forward.9} parent=50 // pred_check_branch
            %73 = sbr.rel (0) target = $region66
          $region65: #{transformer_block_forward.9} parent=50 // pred_region
            loop: start=0, step=1, limit=1
            $region67: #{transformer_block_forward.9} parent=65 // loop_pre_header
              _
            $region68: #{transformer_block_forward.9} parent=65 // loop_header
              %s75 = sphi 0, %s79
              %p76 = scmp.ge.s32.totalorder %s75, 1
              %s80 = sphi %s51, %s51
              %s81 = sphi [#allocation3], [#allocation3]
            $region69: #{transformer_block_forward.9} parent=65 // loop_header_branch
              %78 = sbr.rel (%p76) target = $region73
            $region70: #{transformer_block_forward.9} parent=65 // loop_body
              %v82 = vld [vmem:[%s80] sm:$0xff]
              %83 = vst [vmem:[%s81] sm:$0xff] %v82
              %v84 = vld [vmem:[%s80 + $0x10] sm:$0xff]
              %85 = vst [vmem:[%s81 + $0x8] sm:$0xff] %v84
            $region71: #{transformer_block_forward.9} parent=65 // loop_footer
              %s79 = sadd.s32 1, %s75
            $region72: #{transformer_block_forward.9} parent=65 // loop_footer_branch
              %74 = sbr.rel target = $region68
            $region73: #{transformer_block_forward.9} parent=65 // loop_exit
              _
          $region66: #{transformer_block_forward.9} parent=50 // pred_fallthru
            _
          // Predicated region
          $region74: #{transformer_block_forward.9} parent=50 // pred_check
            _
          $region75: #{transformer_block_forward.9} parent=50 // pred_check_branch
            %87 = sbr.rel target = $region77
          $region76: #{transformer_block_forward.9} parent=50 // pred_region
            _
          $region77: #{transformer_block_forward.9} parent=50 // pred_fallthru
            _
        $region51: #{transformer_block_forward.9} parent=46 // pred_fallthru
          _
        // Predicated region
        $region52: #{transformer_block_forward.9} parent=46 // pred_check
          _
        $region53: #{transformer_block_forward.9} parent=46 // pred_check_branch
          %57 = sbr.rel target = $region55
        $region54: #{transformer_block_forward.9} parent=46 // pred_region
          %s59 = ssub.s32 256, 1
          loop: start=0, step=1, limit=1
          $region56: #{transformer_block_forward.9} parent=54 // loop_pre_header
            _
          $region57: #{transformer_block_forward.9} parent=54 // loop_header
            %s61 = sphi 0, %s65
            %p62 = scmp.ge.s32.totalorder %s61, 1
            %s66 = sphi %s51, %s51
            %s67 = sphi [#allocation3], [#allocation3]
          $region58: #{transformer_block_forward.9} parent=54 // loop_header_branch
            %64 = sbr.rel (%p62) target = $region62
          $region59: #{transformer_block_forward.9} parent=54 // loop_body
            %v68 = vld [vmem:[%s66] sm:%s59]
            %69 = vst [vmem:[%s67] sm:%s59] %v68
            %v70 = vld [vmem:[%s66 + $0x10] sm:%s59]
            %71 = vst [vmem:[%s67 + $0x8] sm:%s59] %v70
          $region60: #{transformer_block_forward.9} parent=54 // loop_footer
            %s65 = sadd.s32 1, %s61
          $region61: #{transformer_block_forward.9} parent=54 // loop_footer_branch
            %60 = sbr.rel target = $region57
          $region62: #{transformer_block_forward.9} parent=54 // loop_exit
            _
        $region55: #{transformer_block_forward.9} parent=46 // pred_fallthru
          _
      $region47: #{transformer_block_forward.9} parent=42 // pred_fallthru
        _
      %88 = vnop
    $region43: #{transformer_block_forward.9} parent=1 // pred_fallthru
      _
    // Predicated region
    $region78: #{transformer_block_forward.9} parent=1 // pred_check
      _
    $region79: #{transformer_block_forward.9} parent=1 // pred_check_branch
      %90 = sbr.rel (0) target = $region81
    $region80: #{transformer_block_forward.9} parent=1 // pred_region
      _
    $region81: #{transformer_block_forward.9} parent=1 // pred_fallthru
      _
    // Predicated region
    $region82: #{transformer_block_forward.9} parent=1 // pred_check
      _
    $region83: #{transformer_block_forward.9} parent=1 // pred_check_branch
      %92 = sbr.rel (0) target = $region85
    $region84: #{transformer_block_forward.9} parent=1 // pred_region
      _
    $region85: #{transformer_block_forward.9} parent=1 // pred_fallthru
      _
    // Predicated region
    $region86: #{transformer_block_forward.9} parent=1 // pred_check
      _
    $region87: #{transformer_block_forward.9} parent=1 // pred_check_branch
      %94 = sbr.rel (0) target = $region89
    $region88: #{transformer_block_forward.9} parent=1 // pred_region
      _
    $region89: #{transformer_block_forward.9} parent=1 // pred_fallthru
      _
    // Predicated region
    $region90: #{transformer_block_forward.9} parent=1 // pred_check
      _
    $region91: #{transformer_block_forward.9} parent=1 // pred_check_branch
      %96 = sbr.rel (0) target = $region93
    $region92: #{transformer_block_forward.9} parent=1 // pred_region
      _
    $region93: #{transformer_block_forward.9} parent=1 // pred_fallthru
      _
    %v97 = vld [vmem:[#allocation2] sm:$0xff]
    %v98 = vld [vmem:[#allocation2 + $0x8] sm:$0xff]
    %v99 = vld [vmem:[#allocation3] sm:$0xff]
    %v100 = vld [vmem:[#allocation3 + $0x8] sm:$0xff]
    %v101 = vxor.u32 %v97, 2147483648
    %v102 = vxor.u32 %v98, 2147483648
    %v103 = vmul.f32 %v101, 1.442695
    %v104 = vpow.pop %v103
    %v105 = vmul.f32 %v102, 1.442695
    %v106 = vpow.pop %v105
    %v107 = vadd.f32 %v104, 1.0
    %v108 = vadd.f32 %v106, 1.0
    %v109 = vrcp.pop %v107
    %v110 = vmul.f32 1.0, %v109
    %v111 = vrcp.pop %v108
    %v112 = vmul.f32 1.0, %v111
    %v113 = vmul.f32 %v97, %v110
    %v114 = vmul.f32 %v98, %v112
    %v115 = vmul.f32 %v113, %v99
    %v116 = vmul.f32 %v114, %v100
    %v117 = vld [vmem:[%s2] sm:$0xff]
    %v118 = vld [vmem:[%s2 + $0x8] sm:$0xff]
    %v119 = vld [vmem:[%s2 + $0x10] sm:$0xff]
    %v120 = vld [vmem:[%s2 + $0x18] sm:$0xff]
    %v121 = vld [vmem:[%s2 + $0x20] sm:$0xff]
    %v122 = vld [vmem:[%s2 + $0x28] sm:$0xff]
    %v123 = vld [vmem:[%s2 + $0x30] sm:$0xff]
    %v124 = vld [vmem:[%s2 + $0x38] sm:$0xff]
    %v125 = vld [vmem:[%s2 + $0x40] sm:$0xff]
    %v126 = vld [vmem:[%s2 + $0x48] sm:$0xff]
    %v127 = vld [vmem:[%s2 + $0x50] sm:$0xff]
    %v128 = vld [vmem:[%s2 + $0x58] sm:$0xff]
    %v129 = vld [vmem:[%s2 + $0x60] sm:$0xff]
    %v130 = vld [vmem:[%s2 + $0x68] sm:$0xff]
    %v131 = vld [vmem:[%s2 + $0x70] sm:$0xff]
    %v132 = vld [vmem:[%s2 + $0x78] sm:$0xff]
    %v133 = vld [vmem:[%s3] sm:$0xff]
    %v134 = vld [vmem:[%s3 + $0x8] sm:$0xff]
    %135 = vmatprep.subr.mxu0 0.0
    %136 = vmatpush1.msra.mxu0 %v132
    %137 = vmatprep.subr.mxu0 0.0
    %138 = vmatpush1.msra.mxu0 %v131
    %139 = vmatprep.subr.mxu0 0.0
    %140 = vmatpush1.msra.mxu0 %v130
    %141 = vmatprep.subr.mxu0 0.0
    %142 = vmatpush1.msra.mxu0 %v129
    %143 = vmatprep.subr.mxu0 0.0
    %144 = vmatpush1.msra.mxu0 %v128
    %145 = vmatprep.subr.mxu0 0.0
    %146 = vmatpush1.msra.mxu0 %v127
    %147 = vmatprep.subr.mxu0 0.0
    %148 = vmatpush1.msra.mxu0 %v126
    %149 = vmatprep.subr.mxu0 0.0
    %150 = vmatpush1.msra.mxu0 %v125
    %151 = vmatprep.subr.mxu0 0.0
    %152 = vmatpush1.msra.mxu0 %v124
    %153 = vmatprep.subr.mxu0 0.0
    %154 = vmatpush1.msra.mxu0 %v123
    %155 = vmatprep.subr.mxu0 0.0
    %156 = vmatpush1.msra.mxu0 %v122
    %157 = vmatprep.subr.mxu0 0.0
    %158 = vmatpush1.msra.mxu0 %v121
    %159 = vmatprep.subr.mxu0 0.0
    %160 = vmatpush1.msra.mxu0 %v120
    %161 = vmatprep.subr.mxu0 0.0
    %162 = vmatpush1.msra.mxu0 %v119
    %163 = vmatprep.subr.mxu0 0.0
    %164 = vmatpush1.msra.mxu0 %v118
    %165 = vmatprep.subr.mxu0 0.0
    %166 = vmatpush1.msra.mxu0 %v117
    %167 = vmatprep.subr.mxu0 0.0
    %168 = vmatpush2.msra.mxu0 0.0
    %169 = vmatprep.subr.mxu0 0.0
    %170 = vmatpush2.msra.mxu0 0.0
    %171 = vmatprep.subr.mxu0 0.0
    %172 = vmatpush2.msra.mxu0 0.0
    %173 = vmatprep.subr.mxu0 0.0
    %174 = vmatpush2.msra.mxu0 0.0
    %175 = vmatprep.subr.mxu0 0.0
    %176 = vmatpush2.msra.mxu0 0.0
    %177 = vmatprep.subr.mxu0 0.0
    %178 = vmatpush2.msra.mxu0 0.0
    %179 = vmatprep.subr.mxu0 0.0
    %180 = vmatpush2.msra.mxu0 0.0
    %181 = vmatprep.subr.mxu0 0.0
    %182 = vmatpush2.msra.mxu0 0.0
    %183 = vmatprep.subr.mxu0 0.0
    %184 = vmatpush2.msra.mxu0 0.0
    %185 = vmatprep.subr.mxu0 0.0
    %186 = vmatpush2.msra.mxu0 0.0
    %187 = vmatprep.subr.mxu0 0.0
    %188 = vmatpush2.msra.mxu0 0.0
    %189 = vmatprep.subr.mxu0 0.0
    %190 = vmatpush2.msra.mxu0 0.0
    %191 = vmatprep.subr.mxu0 0.0
    %192 = vmatpush2.msra.mxu0 0.0
    %193 = vmatprep.subr.mxu0 0.0
    %194 = vmatpush2.msra.mxu0 0.0
    %195 = vmatprep.subr.mxu0 0.0
    %196 = vmatpush2.msra.mxu0 0.0
    %197 = vmatprep.subr.mxu0 0.0
    %198 = vmatpush2.msra.mxu0 0.0
    %199 = vmatprep.mubr.f32.mxu0 0.0
    %200 = vmatmul.mubr.f32.gmra.mxu0 %v115
    %v201 = vpop.f32.mrf.mxu0
    %v202 = vadd.f32 %v133, %v201
    %v203 = vpop.f32.mrf.mxu0
    %204 = vmatprep.mubr.f32.mxu0 0.0
    %205 = vmatmul.mubr.f32.gmra.mxu0 %v116
    %v206 = vpop.f32.mrf.mxu0
    %v207 = vadd.f32 %v134, %v206
    %v208 = vpop.f32.mrf.mxu0
    %209 = vdwg.mxu0
    %vm210 = vcmask 261120
    %211 = vst.msk [vmem:[#allocation4] sm:$0xff] %vm210, %v202
    %212 = vst.msk [vmem:[#allocation4 + $0x8] sm:$0xff] %vm210, %v207
    // Predicated region
    $region94: #{transformer_block_forward.9} parent=1 // pred_check
      _
    $region95: #{transformer_block_forward.9} parent=1 // pred_check_branch
      %214 = sbr.rel (0) target = $region97
    $region96: #{transformer_block_forward.9} parent=1 // pred_region
      %s216 = ssub.s32 256, 256
      %217 = vsyncadd [#allocation5], %s216
      %s218 = sshll.u32 [#allocation4], 4
      %s219 = int_to_ptr.vmem [resolvable:$true] %s218
      %224 = dma.vmem_to_hbm [thread:$0]  %s219, 256, %s4, [#allocation5], 128, 128, 8
    $region97: #{transformer_block_forward.9} parent=1 // pred_fallthru
      _
    // Predicated region
    $region98: #{transformer_block_forward.9} parent=1 // pred_check
      _
    $region99: #{transformer_block_forward.9} parent=1 // pred_check_branch
      %226 = sbr.rel (0) target = $region101
    $region100: #{transformer_block_forward.9} parent=1 // pred_region
      %227 = dma.done [#allocation5], 256
    $region101: #{transformer_block_forward.9} parent=1 // pred_fallthru
      _
    %228 = vsyncpa [#allocation5], 1

// kernel: transformer_block_forward.6
$region0: #{transformer_block_forward.6}
  #allocation0 [shape = 'u32[]', space=smem, size = 0x4, offset = 0x4, fixed_abs, tag = 'smem constant byte address 0x4 - core index']
  #allocation1 [shape = 'u32[144,128]{1,0:T(1,128)}', space=vmem, size = 0x12000, scoped, tag = 'internal scratch']
  %s0 = inlined_call_operand.vmem [shape: f32[4,8,16], index: 0, kind: input, shape index: {}]
  %s1 = inlined_call_operand.vmem [shape: f32[4,8,16], index: 1, kind: input, shape index: {}]
  %s2 = inlined_call_operand.vmem [shape: f32[4,8,16], index: 2, kind: input, shape index: {}]
  %s3 = inlined_call_operand.vmem [shape: f32[1,8,16], index: 3, kind: input, shape index: {}]
  %s4 = inlined_call_operand.vmem [shape: f32[1,8,16], index: 4, kind: input, shape index: {}]
  %s5 = inlined_call_operand.vmem [shape: f32[4,8,16], index: 5, kind: output, shape index: {}]
  %s6 = sld [smem:[#allocation0]]
  $region30: #{transformer_block_forward.6} parent=0
    _
  %s8 = ssub.s32 1, %s6
  %s9 = scalar_select 0, %s8, %s6
  // Predicated region
  $region2: #{transformer_block_forward.6} parent=0 // pred_check
    _
  $region3: #{transformer_block_forward.6} parent=0 // pred_check_branch
    %11 = sbr.rel (0) target = $region5
  $region4: #{transformer_block_forward.6} parent=0 // pred_region
    _
  $region5: #{transformer_block_forward.6} parent=0 // pred_fallthru
    _
  // Predicated region
  $region6: #{transformer_block_forward.6} parent=0 // pred_check
    _
  $region7: #{transformer_block_forward.6} parent=0 // pred_check_branch
    %13 = sbr.rel (0) target = $region9
  $region8: #{transformer_block_forward.6} parent=0 // pred_region
    _
  $region9: #{transformer_block_forward.6} parent=0 // pred_fallthru
    _
  // Predicated region
  $region10: #{transformer_block_forward.6} parent=0 // pred_check
    _
  $region11: #{transformer_block_forward.6} parent=0 // pred_check_branch
    %15 = sbr.rel (0) target = $region13
  $region12: #{transformer_block_forward.6} parent=0 // pred_region
    _
  $region13: #{transformer_block_forward.6} parent=0 // pred_fallthru
    _
  // Predicated region
  $region14: #{transformer_block_forward.6} parent=0 // pred_check
    _
  $region15: #{transformer_block_forward.6} parent=0 // pred_check_branch
    %17 = sbr.rel (0) target = $region17
  $region16: #{transformer_block_forward.6} parent=0 // pred_region
    _
  $region17: #{transformer_block_forward.6} parent=0 // pred_fallthru
    _
  // Predicated region
  $region18: #{transformer_block_forward.6} parent=0 // pred_check
    _
  $region19: #{transformer_block_forward.6} parent=0 // pred_check_branch
    %19 = sbr.rel (0) target = $region21
  $region20: #{transformer_block_forward.6} parent=0 // pred_region
    _
  $region21: #{transformer_block_forward.6} parent=0 // pred_fallthru
    _
  %v20 = vld [vmem:[%s3] sm:$0xff]
  %v21 = vld [vmem:[%s4] sm:$0xff]
  %v22 = vld [vmem:[%s0] sm:$0xff]
  %v23 = vld [vmem:[%s0 + $0x8] sm:$0xff]
  %v24 = vld [vmem:[%s0 + $0x10] sm:$0xff]
  %v25 = vld [vmem:[%s0 + $0x18] sm:$0xff]
  %v26 = vmul.f32 %v22, 0.25
  %v27 = vmul.f32 %v23, 0.25
  %v28 = vmul.f32 %v24, 0.25
  %v29 = vmul.f32 %v25, 0.25
  %v30 = vld [vmem:[%s1] sm:$0xff]
  %v31 = vld [vmem:[%s1 + $0x8] sm:$0xff]
  %v32 = vld [vmem:[%s1 + $0x10] sm:$0xff]
  %v33 = vld [vmem:[%s1 + $0x18] sm:$0xff]
  %v34 = vmul.f32 %v26, %v20
  %v35 = vmul.f32 %v27, %v20
  %v36 = vmul.f32 %v28, %v20
  %v37 = vmul.f32 %v29, %v20
  %vm38 = vcmask 1047680
  %39 = vrot.lane.b32.xlu0 %v26, 16
  %v40 = vpop.permute.xlu0 %39
  %v41 = vsel %vm38, %v40, %v26
  %42 = vrot.lane.b32.xlu0 %v27, 16
  %v43 = vpop.permute.xlu0 %42
  %v44 = vsel %vm38, %v43, %v27
  %45 = vrot.lane.b32.xlu0 %v28, 16
  %v46 = vpop.permute.xlu0 %45
  %v47 = vsel %vm38, %v46, %v28
  %48 = vrot.lane.b32.xlu0 %v29, 16
  %v49 = vpop.permute.xlu0 %48
  %v50 = vsel %vm38, %v49, %v29
  %51 = vrot.lane.b32.xlu0 %v41, 16
  %v52 = vpop.permute.xlu0 %51
  %53 = vrot.lane.b32.xlu0 %v44, 16
  %v54 = vpop.permute.xlu0 %53
  %55 = vrot.lane.b32.xlu0 %v47, 16
  %v56 = vpop.permute.xlu0 %55
  %57 = vrot.lane.b32.xlu0 %v50, 16
  %v58 = vpop.permute.xlu0 %57
  %v59 = vsel %vm38, %v52, %v26
  %v60 = vsel %vm38, %v54, %v27
  %v61 = vsel %vm38, %v56, %v28
  %v62 = vsel %vm38, %v58, %v29
  %64 = vrot.lane.b32.xlu0 %v21, 8
  %v65 = vpop.permute.xlu0 %64
  %v67 = vmul.f32 %v59, %v65
  %v68 = vmul.f32 %v60, %v65
  %v69 = vmul.f32 %v61, %v65
  %v70 = vmul.f32 %v62, %v65
  %75 = vrot.lane.b32.xlu0 %v67, 120
  %v76 = vpop.permute.xlu0 %75
  %77 = vrot.lane.b32.xlu0 %v68, 120
  %v78 = vpop.permute.xlu0 %77
  %79 = vrot.lane.b32.xlu0 %v69, 120
  %v80 = vpop.permute.xlu0 %79
  %81 = vrot.lane.b32.xlu0 %v70, 120
  %v82 = vpop.permute.xlu0 %81
  %v87 = vadd.f32 %v34, %v76
  %v88 = vadd.f32 %v35, %v78
  %v89 = vadd.f32 %v36, %v80
  %v90 = vadd.f32 %v37, %v82
  %v91 = vmul.f32 %v30, %v20
  %v92 = vmul.f32 %v31, %v20
  %v93 = vmul.f32 %v32, %v20
  %v94 = vmul.f32 %v33, %v20
  %95 = vrot.lane.b32.xlu0 %v30, 16
  %v96 = vpop.permute.xlu0 %95
  %v97 = vsel %vm38, %v96, %v30
  %98 = vrot.lane.b32.xlu0 %v31, 16
  %v99 = vpop.permute.xlu0 %98
  %v100 = vsel %vm38, %v99, %v31
  %101 = vrot.lane.b32.xlu0 %v32, 16
  %v102 = vpop.permute.xlu0 %101
  %v103 = vsel %vm38, %v102, %v32
  %104 = vrot.lane.b32.xlu0 %v33, 16
  %v105 = vpop.permute.xlu0 %104
  %v106 = vsel %vm38, %v105, %v33
  %107 = vrot.lane.b32.xlu0 %v97, 16
  %v108 = vpop.permute.xlu0 %107
  %109 = vrot.lane.b32.xlu0 %v100, 16
  %v110 = vpop.permute.xlu0 %109
  %111 = vrot.lane.b32.xlu0 %v103, 16
  %v112 = vpop.permute.xlu0 %111
  %113 = vrot.lane.b32.xlu0 %v106, 16
  %v114 = vpop.permute.xlu0 %113
  %v115 = vsel %vm38, %v108, %v30
  %v116 = vsel %vm38, %v110, %v31
  %v117 = vsel %vm38, %v112, %v32
  %v118 = vsel %vm38, %v114, %v33
  %v119 = vmul.f32 %v115, %v65
  %v120 = vmul.f32 %v116, %v65
  %v121 = vmul.f32 %v117, %v65
  %v122 = vmul.f32 %v118, %v65
  %127 = vrot.lane.b32.xlu0 %v119, 120
  %v128 = vpop.permute.xlu0 %127
  %129 = vrot.lane.b32.xlu0 %v120, 120
  %v130 = vpop.permute.xlu0 %129
  %131 = vrot.lane.b32.xlu0 %v121, 120
  %v132 = vpop.permute.xlu0 %131
  %133 = vrot.lane.b32.xlu0 %v122, 120
  %v134 = vpop.permute.xlu0 %133
  %v139 = vadd.f32 %v91, %v128
  %v140 = vadd.f32 %v92, %v130
  %v141 = vadd.f32 %v93, %v132
  %v142 = vadd.f32 %v94, %v134
  %vm143 = vcmask 130048
  %v145 = vsel %vm143, %v87, 0
  %v148 = vsel %vm143, %v139, 0
  %150 = vmatprep.subr.mxu0 0.0
  %151 = vmatpush1.xpose.msra.mxu0 0.0
  %152 = vmatprep.subr.mxu0 0.0
  %153 = vmatpush1.xpose.msra.mxu0 0.0
  %154 = vmatprep.subr.mxu0 0.0
  %155 = vmatpush1.xpose.msra.mxu0 0.0
  %156 = vmatprep.subr.mxu0 0.0
  %157 = vmatpush1.xpose.msra.mxu0 0.0
  %158 = vmatprep.subr.mxu0 0.0
  %159 = vmatpush1.xpose.msra.mxu0 0.0
  %160 = vmatprep.subr.mxu0 0.0
  %161 = vmatpush1.xpose.msra.mxu0 0.0
  %162 = vmatprep.subr.mxu0 0.0
  %163 = vmatpush1.xpose.msra.mxu0 0.0
  %164 = vmatprep.subr.mxu0 0.0
  %165 = vmatpush1.xpose.msra.mxu0 0.0
  %166 = vmatprep.subr.mxu0 0.0
  %167 = vmatpush1.xpose.msra.mxu0 0.0
  %168 = vmatprep.subr.mxu0 0.0
  %169 = vmatpush1.xpose.msra.mxu0 0.0
  %170 = vmatprep.subr.mxu0 0.0
  %171 = vmatpush1.xpose.msra.mxu0 0.0
  %172 = vmatprep.subr.mxu0 0.0
  %173 = vmatpush1.xpose.msra.mxu0 0.0
  %174 = vmatprep.subr.mxu0 0.0
  %175 = vmatpush1.xpose.msra.mxu0 0.0
  %176 = vmatprep.subr.mxu0 0.0
  %177 = vmatpush1.xpose.msra.mxu0 0.0
  %178 = vmatprep.subr.mxu0 0.0
  %179 = vmatpush1.xpose.msra.mxu0 0.0
  %180 = vmatprep.subr.mxu0 0.0
  %181 = vmatpush1.xpose.msra.mxu0 %v148
  %182 = vmatprep.subr.mxu0 0.0
  %183 = vmatpush2.xpose.msra.mxu0 0.0
  %184 = vmatprep.subr.mxu0 0.0
  %185 = vmatpush2.xpose.msra.mxu0 0.0
  %186 = vmatprep.subr.mxu0 0.0
  %187 = vmatpush2.xpose.msra.mxu0 0.0
  %188 = vmatprep.subr.mxu0 0.0
  %189 = vmatpush2.xpose.msra.mxu0 0.0
  %190 = vmatprep.subr.mxu0 0.0
  %191 = vmatpush2.xpose.msra.mxu0 0.0
  %192 = vmatprep.subr.mxu0 0.0
  %193 = vmatpush2.xpose.msra.mxu0 0.0
  %194 = vmatprep.subr.mxu0 0.0
  %195 = vmatpush2.xpose.msra.mxu0 0.0
  %196 = vmatprep.subr.mxu0 0.0
  %197 = vmatpush2.xpose.msra.mxu0 0.0
  %198 = vmatprep.subr.mxu0 0.0
  %199 = vmatpush2.xpose.msra.mxu0 0.0
  %200 = vmatprep.subr.mxu0 0.0
  %201 = vmatpush2.xpose.msra.mxu0 0.0
  %202 = vmatprep.subr.mxu0 0.0
  %203 = vmatpush2.xpose.msra.mxu0 0.0
  %204 = vmatprep.subr.mxu0 0.0
  %205 = vmatpush2.xpose.msra.mxu0 0.0
  %206 = vmatprep.subr.mxu0 0.0
  %207 = vmatpush2.xpose.msra.mxu0 0.0
  %208 = vmatprep.subr.mxu0 0.0
  %209 = vmatpush2.xpose.msra.mxu0 0.0
  %210 = vmatprep.subr.mxu0 0.0
  %211 = vmatpush2.xpose.msra.mxu0 0.0
  %212 = vmatprep.subr.mxu0 0.0
  %213 = vmatpush2.xpose.msra.mxu0 0.0
  %214 = vmatprep.mubr.f32.mxu0 0.0
  %215 = vmatmul.mubr.f32.gmra.mxu0 %v145
  %v216 = vpop.f32.mrf.mxu0
  %v217 = vadd.f32 0.0, %v216
  %v218 = vpop.f32.mrf.mxu0
  %219 = vdwg.mxu0
  %v221 = vsel %vm143, %v88, 0
  %v224 = vsel %vm143, %v140, 0
  %226 = vmatprep.subr.mxu0 0.0
  %227 = vmatpush1.xpose.msra.mxu0 0.0
  %228 = vmatprep.subr.mxu0 0.0
  %229 = vmatpush1.xpose.msra.mxu0 0.0
  %230 = vmatprep.subr.mxu0 0.0
  %231 = vmatpush1.xpose.msra.mxu0 0.0
  %232 = vmatprep.subr.mxu0 0.0
  %233 = vmatpush1.xpose.msra.mxu0 0.0
  %234 = vmatprep.subr.mxu0 0.0
  %235 = vmatpush1.xpose.msra.mxu0 0.0
  %236 = vmatprep.subr.mxu0 0.0
  %237 = vmatpush1.xpose.msra.mxu0 0.0
  %238 = vmatprep.subr.mxu0 0.0
  %239 = vmatpush1.xpose.msra.mxu0 0.0
  %240 = vmatprep.subr.mxu0 0.0
  %241 = vmatpush1.xpose.msra.mxu0 0.0
  %242 = vmatprep.subr.mxu0 0.0
  %243 = vmatpush1.xpose.msra.mxu0 0.0
  %244 = vmatprep.subr.mxu0 0.0
  %245 = vmatpush1.xpose.msra.mxu0 0.0
  %246 = vmatprep.subr.mxu0 0.0
  %247 = vmatpush1.xpose.msra.mxu0 0.0
  %248 = vmatprep.subr.mxu0 0.0
  %249 = vmatpush1.xpose.msra.mxu0 0.0
  %250 = vmatprep.subr.mxu0 0.0
  %251 = vmatpush1.xpose.msra.mxu0 0.0
  %252 = vmatprep.subr.mxu0 0.0
  %253 = vmatpush1.xpose.msra.mxu0 0.0
  %254 = vmatprep.subr.mxu0 0.0
  %255 = vmatpush1.xpose.msra.mxu0 0.0
  %256 = vmatprep.subr.mxu0 0.0
  %257 = vmatpush1.xpose.msra.mxu0 %v224
  %258 = vmatprep.subr.mxu0 0.0
  %259 = vmatpush2.xpose.msra.mxu0 0.0
  %260 = vmatprep.subr.mxu0 0.0
  %261 = vmatpush2.xpose.msra.mxu0 0.0
  %262 = vmatprep.subr.mxu0 0.0
  %263 = vmatpush2.xpose.msra.mxu0 0.0
  %264 = vmatprep.subr.mxu0 0.0
  %265 = vmatpush2.xpose.msra.mxu0 0.0
  %266 = vmatprep.subr.mxu0 0.0
  %267 = vmatpush2.xpose.msra.mxu0 0.0
  %268 = vmatprep.subr.mxu0 0.0
  %269 = vmatpush2.xpose.msra.mxu0 0.0
  %270 = vmatprep.subr.mxu0 0.0
  %271 = vmatpush2.xpose.msra.mxu0 0.0
  %272 = vmatprep.subr.mxu0 0.0
  %273 = vmatpush2.xpose.msra.mxu0 0.0
  %274 = vmatprep.subr.mxu0 0.0
  %275 = vmatpush2.xpose.msra.mxu0 0.0
  %276 = vmatprep.subr.mxu0 0.0
  %277 = vmatpush2.xpose.msra.mxu0 0.0
  %278 = vmatprep.subr.mxu0 0.0
  %279 = vmatpush2.xpose.msra.mxu0 0.0
  %280 = vmatprep.subr.mxu0 0.0
  %281 = vmatpush2.xpose.msra.mxu0 0.0
  %282 = vmatprep.subr.mxu0 0.0
  %283 = vmatpush2.xpose.msra.mxu0 0.0
  %284 = vmatprep.subr.mxu0 0.0
  %285 = vmatpush2.xpose.msra.mxu0 0.0
  %286 = vmatprep.subr.mxu0 0.0
  %287 = vmatpush2.xpose.msra.mxu0 0.0
  %288 = vmatprep.subr.mxu0 0.0
  %289 = vmatpush2.xpose.msra.mxu0 0.0
  %290 = vmatprep.mubr.f32.mxu0 0.0
  %291 = vmatmul.mubr.f32.gmra.mxu0 %v221
  %v292 = vpop.f32.mrf.mxu0
  %v293 = vadd.f32 0.0, %v292
  %v294 = vpop.f32.mrf.mxu0
  %295 = vdwg.mxu0
  %v297 = vsel %vm143, %v89, 0
  %v300 = vsel %vm143, %v141, 0
  %302 = vmatprep.subr.mxu0 0.0
  %303 = vmatpush1.xpose.msra.mxu0 0.0
  %304 = vmatprep.subr.mxu0 0.0
  %305 = vmatpush1.xpose.msra.mxu0 0.0
  %306 = vmatprep.subr.mxu0 0.0
  %307 = vmatpush1.xpose.msra.mxu0 0.0
  %308 = vmatprep.subr.mxu0 0.0
  %309 = vmatpush1.xpose.msra.mxu0 0.0
  %310 = vmatprep.subr.mxu0 0.0
  %311 = vmatpush1.xpose.msra.mxu0 0.0
  %312 = vmatprep.subr.mxu0 0.0
  %313 = vmatpush1.xpose.msra.mxu0 0.0
  %314 = vmatprep.subr.mxu0 0.0
  %315 = vmatpush1.xpose.msra.mxu0 0.0
  %316 = vmatprep.subr.mxu0 0.0
  %317 = vmatpush1.xpose.msra.mxu0 0.0
  %318 = vmatprep.subr.mxu0 0.0
  %319 = vmatpush1.xpose.msra.mxu0 0.0
  %320 = vmatprep.subr.mxu0 0.0
  %321 = vmatpush1.xpose.msra.mxu0 0.0
  %322 = vmatprep.subr.mxu0 0.0
  %323 = vmatpush1.xpose.msra.mxu0 0.0
  %324 = vmatprep.subr.mxu0 0.0
  %325 = vmatpush1.xpose.msra.mxu0 0.0
  %326 = vmatprep.subr.mxu0 0.0
  %327 = vmatpush1.xpose.msra.mxu0 0.0
  %328 = vmatprep.subr.mxu0 0.0
  %329 = vmatpush1.xpose.msra.mxu0 0.0
  %330 = vmatprep.subr.mxu0 0.0
  %331 = vmatpush1.xpose.msra.mxu0 0.0
  %332 = vmatprep.subr.mxu0 0.0
  %333 = vmatpush1.xpose.msra.mxu0 %v300
  %334 = vmatprep.subr.mxu0 0.0
  %335 = vmatpush2.xpose.msra.mxu0 0.0
  %336 = vmatprep.subr.mxu0 0.0
  %337 = vmatpush2.xpose.msra.mxu0 0.0
  %338 = vmatprep.subr.mxu0 0.0
  %339 = vmatpush2.xpose.msra.mxu0 0.0
  %340 = vmatprep.subr.mxu0 0.0
  %341 = vmatpush2.xpose.msra.mxu0 0.0
  %342 = vmatprep.subr.mxu0 0.0
  %343 = vmatpush2.xpose.msra.mxu0 0.0
  %344 = vmatprep.subr.mxu0 0.0
  %345 = vmatpush2.xpose.msra.mxu0 0.0
  %346 = vmatprep.subr.mxu0 0.0
  %347 = vmatpush2.xpose.msra.mxu0 0.0
  %348 = vmatprep.subr.mxu0 0.0
  %349 = vmatpush2.xpose.msra.mxu0 0.0
  %350 = vmatprep.subr.mxu0 0.0
  %351 = vmatpush2.xpose.msra.mxu0 0.0
  %352 = vmatprep.subr.mxu0 0.0
  %353 = vmatpush2.xpose.msra.mxu0 0.0
  %354 = vmatprep.subr.mxu0 0.0
  %355 = vmatpush2.xpose.msra.mxu0 0.0
  %356 = vmatprep.subr.mxu0 0.0
  %357 = vmatpush2.xpose.msra.mxu0 0.0
  %358 = vmatprep.subr.mxu0 0.0
  %359 = vmatpush2.xpose.msra.mxu0 0.0
  %360 = vmatprep.subr.mxu0 0.0
  %361 = vmatpush2.xpose.msra.mxu0 0.0
  %362 = vmatprep.subr.mxu0 0.0
  %363 = vmatpush2.xpose.msra.mxu0 0.0
  %364 = vmatprep.subr.mxu0 0.0
  %365 = vmatpush2.xpose.msra.mxu0 0.0
  %366 = vmatprep.mubr.f32.mxu0 0.0
  %367 = vmatmul.mubr.f32.gmra.mxu0 %v297
  %v368 = vpop.f32.mrf.mxu0
  %v369 = vadd.f32 0.0, %v368
  %v370 = vpop.f32.mrf.mxu0
  %371 = vdwg.mxu0
  %v373 = vsel %vm143, %v90, 0
  %v376 = vsel %vm143, %v142, 0
  %378 = vmatprep.subr.mxu0 0.0
  %379 = vmatpush1.xpose.msra.mxu0 0.0
  %380 = vmatprep.subr.mxu0 0.0
  %381 = vmatpush1.xpose.msra.mxu0 0.0
  %382 = vmatprep.subr.mxu0 0.0
  %383 = vmatpush1.xpose.msra.mxu0 0.0
  %384 = vmatprep.subr.mxu0 0.0
  %385 = vmatpush1.xpose.msra.mxu0 0.0
  %386 = vmatprep.subr.mxu0 0.0
  %387 = vmatpush1.xpose.msra.mxu0 0.0
  %388 = vmatprep.subr.mxu0 0.0
  %389 = vmatpush1.xpose.msra.mxu0 0.0
  %390 = vmatprep.subr.mxu0 0.0
  %391 = vmatpush1.xpose.msra.mxu0 0.0
  %392 = vmatprep.subr.mxu0 0.0
  %393 = vmatpush1.xpose.msra.mxu0 0.0
  %394 = vmatprep.subr.mxu0 0.0
  %395 = vmatpush1.xpose.msra.mxu0 0.0
  %396 = vmatprep.subr.mxu0 0.0
  %397 = vmatpush1.xpose.msra.mxu0 0.0
  %398 = vmatprep.subr.mxu0 0.0
  %399 = vmatpush1.xpose.msra.mxu0 0.0
  %400 = vmatprep.subr.mxu0 0.0
  %401 = vmatpush1.xpose.msra.mxu0 0.0
  %402 = vmatprep.subr.mxu0 0.0
  %403 = vmatpush1.xpose.msra.mxu0 0.0
  %404 = vmatprep.subr.mxu0 0.0
  %405 = vmatpush1.xpose.msra.mxu0 0.0
  %406 = vmatprep.subr.mxu0 0.0
  %407 = vmatpush1.xpose.msra.mxu0 0.0
  %408 = vmatprep.subr.mxu0 0.0
  %409 = vmatpush1.xpose.msra.mxu0 %v376
  %410 = vmatprep.subr.mxu0 0.0
  %411 = vmatpush2.xpose.msra.mxu0 0.0
  %412 = vmatprep.subr.mxu0 0.0
  %413 = vmatpush2.xpose.msra.mxu0 0.0
  %414 = vmatprep.subr.mxu0 0.0
  %415 = vmatpush2.xpose.msra.mxu0 0.0
  %416 = vmatprep.subr.mxu0 0.0
  %417 = vmatpush2.xpose.msra.mxu0 0.0
  %418 = vmatprep.subr.mxu0 0.0
  %419 = vmatpush2.xpose.msra.mxu0 0.0
  %420 = vmatprep.subr.mxu0 0.0
  %421 = vmatpush2.xpose.msra.mxu0 0.0
  %422 = vmatprep.subr.mxu0 0.0
  %423 = vmatpush2.xpose.msra.mxu0 0.0
  %424 = vmatprep.subr.mxu0 0.0
  %425 = vmatpush2.xpose.msra.mxu0 0.0
  %426 = vmatprep.subr.mxu0 0.0
  %427 = vmatpush2.xpose.msra.mxu0 0.0
  %428 = vmatprep.subr.mxu0 0.0
  %429 = vmatpush2.xpose.msra.mxu0 0.0
  %430 = vmatprep.subr.mxu0 0.0
  %431 = vmatpush2.xpose.msra.mxu0 0.0
  %432 = vmatprep.subr.mxu0 0.0
  %433 = vmatpush2.xpose.msra.mxu0 0.0
  %434 = vmatprep.subr.mxu0 0.0
  %435 = vmatpush2.xpose.msra.mxu0 0.0
  %436 = vmatprep.subr.mxu0 0.0
  %437 = vmatpush2.xpose.msra.mxu0 0.0
  %438 = vmatprep.subr.mxu0 0.0
  %439 = vmatpush2.xpose.msra.mxu0 0.0
  %440 = vmatprep.subr.mxu0 0.0
  %441 = vmatpush2.xpose.msra.mxu0 0.0
  %442 = vmatprep.mubr.f32.mxu0 0.0
  %443 = vmatmul.mubr.f32.gmra.mxu0 %v373
  %v444 = vpop.f32.mrf.mxu0
  %v445 = vadd.f32 0.0, %v444
  %v446 = vpop.f32.mrf.mxu0
  %447 = vdwg.mxu0
  %vm448 = vcmask 64512
  %v449 = vsel %vm448, %v217, -inf
  %450 = vmax.xlane.f32.xlu0 %v449
  %v451 = vpop.xlane.xlu0 %450
  %v452 = vsel %vm448, %v293, -inf
  %453 = vmax.xlane.f32.xlu0 %v452
  %v454 = vpop.xlane.xlu0 %453
  %v455 = vsel %vm448, %v369, -inf
  %456 = vmax.xlane.f32.xlu0 %v455
  %v457 = vpop.xlane.xlu0 %456
  %v458 = vsel %vm448, %v445, -inf
  %459 = vmax.xlane.f32.xlu0 %v458
  %v460 = vpop.xlane.xlu0 %459
  %v461 = vsub.f32 %v217, %v451
  %v462 = vsub.f32 %v293, %v454
  %v463 = vsub.f32 %v369, %v457
  %v464 = vsub.f32 %v445, %v460
  %v465 = vmul.f32 %v461, 1.442695
  %v466 = vpow.pop %v465
  %v467 = vmul.f32 %v462, 1.442695
  %v468 = vpow.pop %v467
  %v469 = vmul.f32 %v463, 1.442695
  %v470 = vpow.pop %v469
  %v471 = vmul.f32 %v464, 1.442695
  %v472 = vpow.pop %v471
  %v473 = vsel %vm448, %v466, 0.0
  %474 = vadd.xlane.f32.xlu0 %v473
  %v475 = vpop.xlane.xlu0 %474
  %v476 = vsel %vm448, %v468, 0.0
  %477 = vadd.xlane.f32.xlu0 %v476
  %v478 = vpop.xlane.xlu0 %477
  %v479 = vsel %vm448, %v470, 0.0
  %480 = vadd.xlane.f32.xlu0 %v479
  %v481 = vpop.xlane.xlu0 %480
  %v482 = vsel %vm448, %v472, 0.0
  %483 = vadd.xlane.f32.xlu0 %v482
  %v484 = vpop.xlane.xlu0 %483
  %v485 = vld [vmem:[%s2] sm:$0xff]
  %v486 = vld [vmem:[%s2 + $0x8] sm:$0xff]
  %v487 = vld [vmem:[%s2 + $0x10] sm:$0xff]
  %v488 = vld [vmem:[%s2 + $0x18] sm:$0xff]
  %v490 = vsel %vm448, %v466, 0
  %492 = vmatprep.subr.mxu0 0.0
  %493 = vmatpush1.msra.mxu0 0.0
  %494 = vmatprep.subr.mxu0 0.0
  %495 = vmatpush1.msra.mxu0 0.0
  %496 = vmatprep.subr.mxu0 0.0
  %497 = vmatpush1.msra.mxu0 0.0
  %498 = vmatprep.subr.mxu0 0.0
  %499 = vmatpush1.msra.mxu0 0.0
  %500 = vmatprep.subr.mxu0 0.0
  %501 = vmatpush1.msra.mxu0 0.0
  %502 = vmatprep.subr.mxu0 0.0
  %503 = vmatpush1.msra.mxu0 0.0
  %504 = vmatprep.subr.mxu0 0.0
  %505 = vmatpush1.msra.mxu0 0.0
  %506 = vmatprep.subr.mxu0 0.0
  %507 = vmatpush1.msra.mxu0 0.0
  %508 = vmatprep.subr.mxu0 0.0
  %509 = vmatpush1.msra.mxu0 0.0
  %510 = vmatprep.subr.mxu0 0.0
  %511 = vmatpush1.msra.mxu0 0.0
  %512 = vmatprep.subr.mxu0 0.0
  %513 = vmatpush1.msra.mxu0 0.0
  %514 = vmatprep.subr.mxu0 0.0
  %515 = vmatpush1.msra.mxu0 0.0
  %516 = vmatprep.subr.mxu0 0.0
  %517 = vmatpush1.msra.mxu0 0.0
  %518 = vmatprep.subr.mxu0 0.0
  %519 = vmatpush1.msra.mxu0 0.0
  %520 = vmatprep.subr.mxu0 0.0
  %521 = vmatpush1.msra.mxu0 0.0
  %522 = vmatprep.subr.mxu0 0.0
  %523 = vmatpush1.msra.mxu0 %v485
  %524 = vmatprep.subr.mxu0 0.0
  %525 = vmatpush2.msra.mxu0 0.0
  %526 = vmatprep.subr.mxu0 0.0
  %527 = vmatpush2.msra.mxu0 0.0
  %528 = vmatprep.subr.mxu0 0.0
  %529 = vmatpush2.msra.mxu0 0.0
  %530 = vmatprep.subr.mxu0 0.0
  %531 = vmatpush2.msra.mxu0 0.0
  %532 = vmatprep.subr.mxu0 0.0
  %533 = vmatpush2.msra.mxu0 0.0
  %534 = vmatprep.subr.mxu0 0.0
  %535 = vmatpush2.msra.mxu0 0.0
  %536 = vmatprep.subr.mxu0 0.0
  %537 = vmatpush2.msra.mxu0 0.0
  %538 = vmatprep.subr.mxu0 0.0
  %539 = vmatpush2.msra.mxu0 0.0
  %540 = vmatprep.subr.mxu0 0.0
  %541 = vmatpush2.msra.mxu0 0.0
  %542 = vmatprep.subr.mxu0 0.0
  %543 = vmatpush2.msra.mxu0 0.0
  %544 = vmatprep.subr.mxu0 0.0
  %545 = vmatpush2.msra.mxu0 0.0
  %546 = vmatprep.subr.mxu0 0.0
  %547 = vmatpush2.msra.mxu0 0.0
  %548 = vmatprep.subr.mxu0 0.0
  %549 = vmatpush2.msra.mxu0 0.0
  %550 = vmatprep.subr.mxu0 0.0
  %551 = vmatpush2.msra.mxu0 0.0
  %552 = vmatprep.subr.mxu0 0.0
  %553 = vmatpush2.msra.mxu0 0.0
  %554 = vmatprep.subr.mxu0 0.0
  %555 = vmatpush2.msra.mxu0 0.0
  %556 = vmatprep.mubr.f32.mxu0 0.0
  %557 = vmatmul.mubr.f32.gmra.mxu0 %v490
  %v558 = vpop.f32.mrf.mxu0
  %v559 = vadd.f32 0.0, %v558
  %v560 = vpop.f32.mrf.mxu0
  %561 = vdwg.mxu0
  %v563 = vsel %vm448, %v468, 0
  %565 = vmatprep.subr.mxu0 0.0
  %566 = vmatpush1.msra.mxu0 0.0
  %567 = vmatprep.subr.mxu0 0.0
  %568 = vmatpush1.msra.mxu0 0.0
  %569 = vmatprep.subr.mxu0 0.0
  %570 = vmatpush1.msra.mxu0 0.0
  %571 = vmatprep.subr.mxu0 0.0
  %572 = vmatpush1.msra.mxu0 0.0
  %573 = vmatprep.subr.mxu0 0.0
  %574 = vmatpush1.msra.mxu0 0.0
  %575 = vmatprep.subr.mxu0 0.0
  %576 = vmatpush1.msra.mxu0 0.0
  %577 = vmatprep.subr.mxu0 0.0
  %578 = vmatpush1.msra.mxu0 0.0
  %579 = vmatprep.subr.mxu0 0.0
  %580 = vmatpush1.msra.mxu0 0.0
  %581 = vmatprep.subr.mxu0 0.0
  %582 = vmatpush1.msra.mxu0 0.0
  %583 = vmatprep.subr.mxu0 0.0
  %584 = vmatpush1.msra.mxu0 0.0
  %585 = vmatprep.subr.mxu0 0.0
  %586 = vmatpush1.msra.mxu0 0.0
  %587 = vmatprep.subr.mxu0 0.0
  %588 = vmatpush1.msra.mxu0 0.0
  %589 = vmatprep.subr.mxu0 0.0
  %590 = vmatpush1.msra.mxu0 0.0
  %591 = vmatprep.subr.mxu0 0.0
  %592 = vmatpush1.msra.mxu0 0.0
  %593 = vmatprep.subr.mxu0 0.0
  %594 = vmatpush1.msra.mxu0 0.0
  %595 = vmatprep.subr.mxu0 0.0
  %596 = vmatpush1.msra.mxu0 %v486
  %597 = vmatprep.subr.mxu0 0.0
  %598 = vmatpush2.msra.mxu0 0.0
  %599 = vmatprep.subr.mxu0 0.0
  %600 = vmatpush2.msra.mxu0 0.0
  %601 = vmatprep.subr.mxu0 0.0
  %602 = vmatpush2.msra.mxu0 0.0
  %603 = vmatprep.subr.mxu0 0.0
  %604 = vmatpush2.msra.mxu0 0.0
  %605 = vmatprep.subr.mxu0 0.0
  %606 = vmatpush2.msra.mxu0 0.0
  %607 = vmatprep.subr.mxu0 0.0
  %608 = vmatpush2.msra.mxu0 0.0
  %609 = vmatprep.subr.mxu0 0.0
  %610 = vmatpush2.msra.mxu0 0.0
  %611 = vmatprep.subr.mxu0 0.0
  %612 = vmatpush2.msra.mxu0 0.0
  %613 = vmatprep.subr.mxu0 0.0
  %614 = vmatpush2.msra.mxu0 0.0
  %615 = vmatprep.subr.mxu0 0.0
  %616 = vmatpush2.msra.mxu0 0.0
  %617 = vmatprep.subr.mxu0 0.0
  %618 = vmatpush2.msra.mxu0 0.0
  %619 = vmatprep.subr.mxu0 0.0
  %620 = vmatpush2.msra.mxu0 0.0
  %621 = vmatprep.subr.mxu0 0.0
  %622 = vmatpush2.msra.mxu0 0.0
  %623 = vmatprep.subr.mxu0 0.0
  %624 = vmatpush2.msra.mxu0 0.0
  %625 = vmatprep.subr.mxu0 0.0
  %626 = vmatpush2.msra.mxu0 0.0
  %627 = vmatprep.subr.mxu0 0.0
  %628 = vmatpush2.msra.mxu0 0.0
  %629 = vmatprep.mubr.f32.mxu0 0.0
  %630 = vmatmul.mubr.f32.gmra.mxu0 %v563
  %v631 = vpop.f32.mrf.mxu0
  %v632 = vadd.f32 0.0, %v631
  %v633 = vpop.f32.mrf.mxu0
  %634 = vdwg.mxu0
  %v636 = vsel %vm448, %v470, 0
  %638 = vmatprep.subr.mxu0 0.0
  %639 = vmatpush1.msra.mxu0 0.0
  %640 = vmatprep.subr.mxu0 0.0
  %641 = vmatpush1.msra.mxu0 0.0
  %642 = vmatprep.subr.mxu0 0.0
  %643 = vmatpush1.msra.mxu0 0.0
  %644 = vmatprep.subr.mxu0 0.0
  %645 = vmatpush1.msra.mxu0 0.0
  %646 = vmatprep.subr.mxu0 0.0
  %647 = vmatpush1.msra.mxu0 0.0
  %648 = vmatprep.subr.mxu0 0.0
  %649 = vmatpush1.msra.mxu0 0.0
  %650 = vmatprep.subr.mxu0 0.0
  %651 = vmatpush1.msra.mxu0 0.0
  %652 = vmatprep.subr.mxu0 0.0
  %653 = vmatpush1.msra.mxu0 0.0
  %654 = vmatprep.subr.mxu0 0.0
  %655 = vmatpush1.msra.mxu0 0.0
  %656 = vmatprep.subr.mxu0 0.0
  %657 = vmatpush1.msra.mxu0 0.0
  %658 = vmatprep.subr.mxu0 0.0
  %659 = vmatpush1.msra.mxu0 0.0
  %660 = vmatprep.subr.mxu0 0.0
  %661 = vmatpush1.msra.mxu0 0.0
  %662 = vmatprep.subr.mxu0 0.0
  %663 = vmatpush1.msra.mxu0 0.0
  %664 = vmatprep.subr.mxu0 0.0
  %665 = vmatpush1.msra.mxu0 0.0
  %666 = vmatprep.subr.mxu0 0.0
  %667 = vmatpush1.msra.mxu0 0.0
  %668 = vmatprep.subr.mxu0 0.0
  %669 = vmatpush1.msra.mxu0 %v487
  %670 = vmatprep.subr.mxu0 0.0
  %671 = vmatpush2.msra.mxu0 0.0
  %672 = vmatprep.subr.mxu0 0.0
  %673 = vmatpush2.msra.mxu0 0.0
  %674 = vmatprep.subr.mxu0 0.0
  %675 = vmatpush2.msra.mxu0 0.0
  %676 = vmatprep.subr.mxu0 0.0
  %677 = vmatpush2.msra.mxu0 0.0
  %678 = vmatprep.subr.mxu0 0.0
  %679 = vmatpush2.msra.mxu0 0.0
  %680 = vmatprep.subr.mxu0 0.0
  %681 = vmatpush2.msra.mxu0 0.0
  %682 = vmatprep.subr.mxu0 0.0
  %683 = vmatpush2.msra.mxu0 0.0
  %684 = vmatprep.subr.mxu0 0.0
  %685 = vmatpush2.msra.mxu0 0.0
  %686 = vmatprep.subr.mxu0 0.0
  %687 = vmatpush2.msra.mxu0 0.0
  %688 = vmatprep.subr.mxu0 0.0
  %689 = vmatpush2.msra.mxu0 0.0
  %690 = vmatprep.subr.mxu0 0.0
  %691 = vmatpush2.msra.mxu0 0.0
  %692 = vmatprep.subr.mxu0 0.0
  %693 = vmatpush2.msra.mxu0 0.0
  %694 = vmatprep.subr.mxu0 0.0
  %695 = vmatpush2.msra.mxu0 0.0
  %696 = vmatprep.subr.mxu0 0.0
  %697 = vmatpush2.msra.mxu0 0.0
  %698 = vmatprep.subr.mxu0 0.0
  %699 = vmatpush2.msra.mxu0 0.0
  %700 = vmatprep.subr.mxu0 0.0
  %701 = vmatpush2.msra.mxu0 0.0
  %702 = vmatprep.mubr.f32.mxu0 0.0
  %703 = vmatmul.mubr.f32.gmra.mxu0 %v636
  %v704 = vpop.f32.mrf.mxu0
  %v705 = vadd.f32 0.0, %v704
  %v706 = vpop.f32.mrf.mxu0
  %707 = vdwg.mxu0
  %v709 = vsel %vm448, %v472, 0
  %711 = vmatprep.subr.mxu0 0.0
  %712 = vmatpush1.msra.mxu0 0.0
  %713 = vmatprep.subr.mxu0 0.0
  %714 = vmatpush1.msra.mxu0 0.0
  %715 = vmatprep.subr.mxu0 0.0
  %716 = vmatpush1.msra.mxu0 0.0
  %717 = vmatprep.subr.mxu0 0.0
  %718 = vmatpush1.msra.mxu0 0.0
  %719 = vmatprep.subr.mxu0 0.0
  %720 = vmatpush1.msra.mxu0 0.0
  %721 = vmatprep.subr.mxu0 0.0
  %722 = vmatpush1.msra.mxu0 0.0
  %723 = vmatprep.subr.mxu0 0.0
  %724 = vmatpush1.msra.mxu0 0.0
  %725 = vmatprep.subr.mxu0 0.0
  %726 = vmatpush1.msra.mxu0 0.0
  %727 = vmatprep.subr.mxu0 0.0
  %728 = vmatpush1.msra.mxu0 0.0
  %729 = vmatprep.subr.mxu0 0.0
  %730 = vmatpush1.msra.mxu0 0.0
  %731 = vmatprep.subr.mxu0 0.0
  %732 = vmatpush1.msra.mxu0 0.0
  %733 = vmatprep.subr.mxu0 0.0
  %734 = vmatpush1.msra.mxu0 0.0
  %735 = vmatprep.subr.mxu0 0.0
  %736 = vmatpush1.msra.mxu0 0.0
  %737 = vmatprep.subr.mxu0 0.0
  %738 = vmatpush1.msra.mxu0 0.0
  %739 = vmatprep.subr.mxu0 0.0
  %740 = vmatpush1.msra.mxu0 0.0
  %741 = vmatprep.subr.mxu0 0.0
  %742 = vmatpush1.msra.mxu0 %v488
  %743 = vmatprep.subr.mxu0 0.0
  %744 = vmatpush2.msra.mxu0 0.0
  %745 = vmatprep.subr.mxu0 0.0
  %746 = vmatpush2.msra.mxu0 0.0
  %747 = vmatprep.subr.mxu0 0.0
  %748 = vmatpush2.msra.mxu0 0.0
  %749 = vmatprep.subr.mxu0 0.0
  %750 = vmatpush2.msra.mxu0 0.0
  %751 = vmatprep.subr.mxu0 0.0
  %752 = vmatpush2.msra.mxu0 0.0
  %753 = vmatprep.subr.mxu0 0.0
  %754 = vmatpush2.msra.mxu0 0.0
  %755 = vmatprep.subr.mxu0 0.0
  %756 = vmatpush2.msra.mxu0 0.0
  %757 = vmatprep.subr.mxu0 0.0
  %758 = vmatpush2.msra.mxu0 0.0
  %759 = vmatprep.subr.mxu0 0.0
  %760 = vmatpush2.msra.mxu0 0.0
  %761 = vmatprep.subr.mxu0 0.0
  %762 = vmatpush2.msra.mxu0 0.0
  %763 = vmatprep.subr.mxu0 0.0
  %764 = vmatpush2.msra.mxu0 0.0
  %765 = vmatprep.subr.mxu0 0.0
  %766 = vmatpush2.msra.mxu0 0.0
  %767 = vmatprep.subr.mxu0 0.0
  %768 = vmatpush2.msra.mxu0 0.0
  %769 = vmatprep.subr.mxu0 0.0
  %770 = vmatpush2.msra.mxu0 0.0
  %771 = vmatprep.subr.mxu0 0.0
  %772 = vmatpush2.msra.mxu0 0.0
  %773 = vmatprep.subr.mxu0 0.0
  %774 = vmatpush2.msra.mxu0 0.0
  %775 = vmatprep.mubr.f32.mxu0 0.0
  %776 = vmatmul.mubr.f32.gmra.mxu0 %v709
  %v777 = vpop.f32.mrf.mxu0
  %v778 = vadd.f32 0.0, %v777
  %v779 = vpop.f32.mrf.mxu0
  %780 = vdwg.mxu0
  %v781 = vrcp.pop %v475
  %v782 = vmul.f32 %v559, %v781
  %v783 = vrcp.pop %v478
  %v784 = vmul.f32 %v632, %v783
  %v785 = vrcp.pop %v481
  %v786 = vmul.f32 %v705, %v785
  %v787 = vrcp.pop %v484
  %v788 = vmul.f32 %v778, %v787
  %789 = vst.msk [vmem:[%s5] sm:$0xff] %vm143, %v782
  %790 = vst.msk [vmem:[%s5 + $0x8] sm:$0xff] %vm143, %v784
  %791 = vst.msk [vmem:[%s5 + $0x10] sm:$0xff] %vm143, %v786
  %792 = vst.msk [vmem:[%s5 + $0x18] sm:$0xff] %vm143, %v788
  // Predicated region
  $region22: #{transformer_block_forward.6} parent=0 // pred_check
    _
  $region23: #{transformer_block_forward.6} parent=0 // pred_check_branch
    %794 = sbr.rel (0) target = $region25
  $region24: #{transformer_block_forward.6} parent=0 // pred_region
    _
  $region25: #{transformer_block_forward.6} parent=0 // pred_fallthru
    _
  // Predicated region
  $region26: #{transformer_block_forward.6} parent=0 // pred_check
    _
  $region27: #{transformer_block_forward.6} parent=0 // pred_check_branch
    %796 = sbr.rel (0) target = $region29
  $region28: #{transformer_block_forward.6} parent=0 // pred_region
    _
  $region29: #{transformer_block_forward.6} parent=0 // pred_fallthru
    _

</llo_original>
